<compile_context>
chip_gen: v7x
topology: tpu7x:2x2x1
jax: 0.10.0
libtpu: 0.0.40
codegen_flags: <defaults>
</compile_context>

<pallas_src>
import math

import jax
import jax.numpy as jnp
from jax import lax
from jax.experimental import pallas as pl
from jax.experimental.pallas import tpu as pltpu

BN_EPS = 1e-5
BN_SCALE = 1.0 / math.sqrt(1.0 + BN_EPS)   # eval-mode BatchNorm1d, fresh stats
CONV_K = 9                                 # temporal (node-axis) kernel size
NET_DEPTH = 4                              # encoder/decoder depth of Deep_Priors


def _make_kernel(node_n, n_layers, net_depth, io_pad):
    """Build the fused 10-layer GTC kernel (closes over static sizes)."""

    def kernel(x_ref, a_ref, wgc_ref, bgc_ref, wc_ref, bc_ref, out_ref,
               cur_ref, skip_ref):
        l = pl.program_id(1)
        rows, c_pad = cur_ref.shape

        # Layer 0: bring the (narrow, io_pad-wide) input into the resident
        # activation buffer for this batch tile; padded channels stay 0.
        @pl.when(l == 0)
        def _():
            if io_pad == c_pad:
                cur_ref[...] = x_ref[...]
            else:
                cur_ref[...] = jnp.zeros_like(cur_ref)
                cur_ref[:, :io_pad] = x_ref[...]

        x = cur_ref[...]                                     # (rows, C) f32

        # ---- graph conv: (I_B (x) A) @ (X @ Wgc) + bgc, both matmuls bf16 --
        xw = jnp.dot(x.astype(jnp.bfloat16), wgc_ref[...],
                     preferred_element_type=jnp.float32)     # (rows, C) f32
        gc = jnp.dot(a_ref[...], xw.astype(jnp.bfloat16),
                     preferred_element_type=jnp.float32) + bgc_ref[...]

        # ---- bn1 (uniform eval-mode scale) + Mish, in f32 -------------------
        # mish(y) = y * tanh(softplus(y)); with t = exp(y):
        #   tanh(softplus(y)) = t*(t+2) / (t*(t+2) + 2)
        # -> one EUP exp + one EUP approx reciprocal (no log1p / tanh).
        y = gc * BN_SCALE
        t = jnp.exp(jnp.minimum(y, 20.0))      # exp(20)~4.9e8: no f32 overflow
        num = t * (t + 2.0)
        y = y * (num * pl.reciprocal(num + 2.0, approx=True))

        # ---- Conv1d(C, C, k=9, padding='same') along the node axis ---------
        # Per-tap accumulation: XLU roll + batch-element boundary mask + one
        # (rows,C)x(C,C) bf16 matmul per tap into an f32 accumulator.  bn2 is
        # folded into wc/bc.
        # TODO(synk): at production c_pad=1024 on v7x stream the per-tap
        # (c_pad,c_pad) weight slices from memory_space=pl.ANY instead of
        # holding the full (9C,C) block double-buffered in VMEM.
        node_idx = lax.broadcasted_iota(jnp.int32, (rows, c_pad), 0) % node_n
        conv = jnp.zeros((rows, c_pad), jnp.float32)
        for k in range(CONV_K):
            off = k - (CONV_K // 2)
            shifted = y if off == 0 else pltpu.roll(y, (-off) % rows, 0)
            valid = (node_idx + off >= 0) & (node_idx + off < node_n)
            tap = jnp.where(valid, shifted, 0.0).astype(jnp.bfloat16)
            conv = conv + jnp.dot(tap, wc_ref[pl.ds(k * c_pad, c_pad), :],
                                  preferred_element_type=jnp.float32)
        conv = conv + bc_ref[...]

        # ---- internal residual of the GTC block (adds UNSCALED gc) ---------
        blk = conv + gc

        is_dec = jnp.logical_and(l > net_depth, l <= 2 * net_depth)   # D3..D0
        is_last = l == n_layers - 1                                   # DD

        # Encoder / bottleneck layers: plain resident store.
        @pl.when(jnp.logical_not(jnp.logical_or(is_dec, is_last)))
        def _():
            cur_ref[...] = blk

        # Encoder skip saves (x0..x3), stored in bf16.
        for i in range(net_depth):
            @pl.when(l == i)
            def _(i=i):
                skip_ref[i] = blk.astype(jnp.bfloat16)

        # Decoder layers: fold the external residual (y_i = D_i(..) + x_i)
        # directly into the store (no store+reload round trip).
        for i in range(net_depth):
            @pl.when(l == net_depth + 1 + i)
            def _(i=i):
                cur_ref[...] = blk + skip_ref[net_depth - 1 - i].astype(jnp.float32)

        # Last layer (DD): write the narrow result straight to HBM.
        @pl.when(is_last)
        def _():
            out_ref[...] = blk[:, :io_pad].astype(out_ref.dtype)

    return kernel


def _vmem_limit_bytes(rows, io_pad, c_pad, net_depth):
    f32, bf16, dbl = 4, 2, 2
    est = (dbl * rows * io_pad * f32                 # x blocks
           + dbl * rows * rows * bf16                # a_blk blocks
           + dbl * c_pad * c_pad * bf16              # Wgc blocks
           + dbl * CONV_K * c_pad * c_pad * bf16     # conv W blocks
           + dbl * 2 * c_pad * f32                   # bias blocks
           + dbl * rows * io_pad * f32               # out blocks
           + rows * c_pad * f32                      # resident activation
           + net_depth * rows * c_pad * bf16         # bf16 skips
           + 8 * rows * c_pad * f32)                 # in-kernel temporaries
    # TODO(synk): cap at ~56 MiB (and stream conv weights per tap) on v7x.
    return int(min(max(est * 3 // 2, 32 << 20), 100 << 20))


def deep_priors_pallas(x_pad, a_blk, wgc_all, bgc_all, wc_all, bc_all,
                       node_n, batch_tile, net_depth):
    total_rows, io_pad = x_pad.shape
    n_layers, kc, c_pad = wc_all.shape
    assert kc == CONV_K * c_pad and io_pad <= c_pad
    assert n_layers == 2 * net_depth + 2
    rows = batch_tile * node_n
    num_bt = total_rows // rows

    kernel = _make_kernel(node_n, n_layers, net_depth, io_pad)

    grid_spec = pltpu.PrefetchScalarGridSpec(
        num_scalar_prefetch=0,
        grid=(num_bt, n_layers),
        in_specs=[
            pl.BlockSpec((rows, io_pad), lambda bt, l: (bt, 0)),         # x (l==0)
            pl.BlockSpec((rows, rows), lambda bt, l: (0, 0)),            # block-diag A (bf16)
            pl.BlockSpec((None, c_pad, c_pad), lambda bt, l: (l, 0, 0)), # Wgc[l] bf16
            pl.BlockSpec((None, 1, c_pad), lambda bt, l: (l, 0, 0)),     # bgc[l]
            pl.BlockSpec((None, kc, c_pad), lambda bt, l: (l, 0, 0)),    # conv W[l] bf16
            pl.BlockSpec((None, 1, c_pad), lambda bt, l: (l, 0, 0)),     # conv b[l]
        ],
        out_specs=pl.BlockSpec((rows, io_pad), lambda bt, l: (bt, 0)),
        scratch_shapes=[
            pltpu.VMEM((rows, c_pad), jnp.float32),                # resident activation
            pltpu.VMEM((net_depth, rows, c_pad), jnp.bfloat16),    # encoder skips (bf16)
        ],
    )
    return pl.pallas_call(
        kernel,
        out_shape=jax.ShapeDtypeStruct((total_rows, io_pad), jnp.float32),
        grid_spec=grid_spec,
        compiler_params=pltpu.CompilerParams(
            dimension_semantics=("parallel", "arbitrary"),
            vmem_limit_bytes=_vmem_limit_bytes(rows, io_pad, c_pad, net_depth)),
    )(x_pad, a_blk, wgc_all, bgc_all, wc_all, bc_all)


def init_gtc_layer(key, c_in, c_out, c_pad):
    k1, k2, k3, k4 = jax.random.split(key, 4)
    stdv = 1.0 / math.sqrt(c_out)                  # GraphConvolution.reset_parameters
    wgc = jax.random.uniform(k1, (c_in, c_out), jnp.float32, -stdv, stdv)
    bgc = jax.random.uniform(k2, (c_out,), jnp.float32, -stdv, stdv)
    bound = 1.0 / math.sqrt(c_out * CONV_K)        # Conv1d default init
    wconv = jax.random.uniform(k3, (c_out, c_out, CONV_K), jnp.float32, -bound, bound)
    bconv = jax.random.uniform(k4, (c_out,), jnp.float32, -bound, bound)

    wgc_p = jnp.zeros((c_pad, c_pad), jnp.float32).at[:c_in, :c_out].set(wgc)
    bgc_p = jnp.zeros((1, c_pad), jnp.float32).at[0, :c_out].set(bgc)
    # Unfolded conv weight: wc[k*c_pad + ci, co] = BN_SCALE * wconv[co, ci, k]
    # (bn2's uniform eval-mode scale folded in).
    wct = jnp.transpose(wconv, (2, 1, 0)) * BN_SCALE                  # (9, ci, co)
    wc_p = (jnp.zeros((CONV_K, c_pad, c_pad), jnp.float32)
            .at[:, :c_out, :c_out].set(wct)
            .reshape(CONV_K * c_pad, c_pad))
    bc_p = jnp.zeros((1, c_pad), jnp.float32).at[0, :c_out].set(bconv * BN_SCALE)
    return wgc_p, bgc_p, wc_p, bc_p


def init_deep_priors_params(key, layer_dims, c_pad):
    keys = jax.random.split(key, len(layer_dims))
    stacks = [init_gtc_layer(k, ci, co, c_pad) for k, (ci, co) in zip(keys, layer_dims)]
    wgc, bgc, wc, bc = (jnp.stack(t) for t in zip(*stacks))
    return dict(wgc=wgc.astype(jnp.bfloat16), bgc=bgc,
                wc=wc.astype(jnp.bfloat16), bc=bc)


def deep_priors_forward(ori, acc, A, params, node_n, f_len, batch_tile=None):
    b = ori.shape[0]
    end_channel = f_len * 3
    c_pad = params["wgc"].shape[-1]
    io_pad = -(-end_channel // 128) * 128            # narrow, lane-dense I/O width
    assert io_pad <= c_pad

    # encoder_input = cat([ori.flatten(2), acc.flatten(2)], -1).reshape(b,f,N,-1)
    enc = jnp.concatenate([ori.reshape(b, f_len, -1), acc.reshape(b, f_len, -1)],
                          axis=2)
    enc = enc.reshape(b, f_len, node_n, -1)
    # GraphConvolution 4-D branch: transpose(1,2) then merge (f, 3) -> f*3.
    x = jnp.transpose(enc, (0, 2, 1, 3)).reshape(b * node_n, end_channel)
    x_pad = jnp.zeros((b * node_n, io_pad), jnp.float32).at[:, :end_channel].set(x)

    if batch_tile is None:
        # >=2 batch tiles so the "parallel" bt grid axis can shard across the
        # two TensorCores on v7x.  At production batch sizes keep
        # rows = batch_tile * node_n large (>=256) so the per-layer weight DMA
        # is amortized (rows ~= bf16 flops per weight byte).
        batch_tile = b // 2 if (b >= 2 and b % 2 == 0) else b
    assert b % batch_tile == 0

    a_blk = jnp.kron(jnp.eye(batch_tile, dtype=jnp.float32),
                     A.astype(jnp.float32)).astype(jnp.bfloat16)

    out_pad = deep_priors_pallas(x_pad, a_blk, params["wgc"], params["bgc"],
                                 params["wc"], params["bc"],
                                 node_n, batch_tile, net_depth=NET_DEPTH)
    y = out_pad[:, :end_channel].reshape(b, node_n, f_len, 3)
    return jnp.transpose(y, (0, 2, 1, 3))            # (b, f, node_n, 3)


def deep_priors_reference(ori, acc, A, params, node_n, f_len, net_depth=NET_DEPTH):
    """Pure-JAX mirror of the kernel math (same bf16 cast points, exact Mish,
    padded-slice conv instead of rolls) used as a numerical cross-check."""
    b = ori.shape[0]
    end_channel = f_len * 3
    n_layers, _, c_pad = params["wgc"].shape

    enc = jnp.concatenate([ori.reshape(b, f_len, -1), acc.reshape(b, f_len, -1)], 2)
    enc = enc.reshape(b, f_len, node_n, -1)
    x = jnp.transpose(enc, (0, 2, 1, 3)).reshape(b, node_n, end_channel)
    cur = jnp.pad(x, ((0, 0), (0, 0), (0, c_pad - end_channel)))
    a_bf = A.astype(jnp.bfloat16)

    def gtc(x, l):
        xw = jnp.einsum('bnc,cd->bnd', x.astype(jnp.bfloat16), params["wgc"][l],
                        preferred_element_type=jnp.float32)
        gc = jnp.einsum('ij,bjc->bic', a_bf, xw.astype(jnp.bfloat16),
                        preferred_element_type=jnp.float32) + params["bgc"][l]
        y = gc * BN_SCALE
        y = y * jnp.tanh(jax.nn.softplus(y))
        wc3 = params["wc"][l].reshape(CONV_K, c_pad, c_pad)
        yp = jnp.pad(y, ((0, 0), (CONV_K // 2, CONV_K // 2), (0, 0)))
        conv = jnp.zeros_like(gc)
        for k in range(CONV_K):
            conv = conv + jnp.einsum('bnc,cd->bnd',
                                     yp[:, k:k + node_n, :].astype(jnp.bfloat16),
                                     wc3[k], preferred_element_type=jnp.float32)
        conv = conv + params["bc"][l]
        return conv + gc

    skips = []
    for l in range(net_depth):                         # E0..E3
        cur = gtc(cur, l)
        skips.append(cur.astype(jnp.bfloat16))
    cur = gtc(cur, net_depth)                          # ED
    for i in range(net_depth):                         # D3..D0 (+ skips)
        cur = gtc(cur, net_depth + 1 + i) + skips[net_depth - 1 - i].astype(jnp.float32)
    cur = gtc(cur, 2 * net_depth + 1)                  # DD
    y = cur[:, :, :end_channel].reshape(b, node_n, f_len, 3)
    return jnp.transpose(y, (0, 2, 1, 3))


if __name__ == "__main__":
    key = jax.random.PRNGKey(0)
    B, F_LEN, NODE_N = 2, 8, 16
    # Scaled-down filter widths for a small runnable demo
    # (original Deep_Priors uses [1024, 512, 256, 128, 128]).
    filters = [64, 48, 32, 16, 16]
    end_channel = F_LEN * 3                                     # 24

    # Pad every layer's channel width to a lane-dense multiple of 128.
    c_pad = -(-max([end_channel] + filters) // 128) * 128       # -> 128

    keys = jax.random.split(key, 5)
    # ori flattens to 2*N values per frame, acc to N -> concat = 3*N, as the
    # module's reshape (b, f, node_n, -1) requires.
    ori = jax.random.normal(keys[0], (B, F_LEN, NODE_N, 2), jnp.float32)
    acc = jax.random.normal(keys[1], (B, F_LEN, NODE_N, 1), jnp.float32)

    Adj = jax.random.uniform(keys[2], (NODE_N, NODE_N), jnp.float32, 0.0, 1.0) / NODE_N
    Q = jax.random.uniform(keys[3], (NODE_N, NODE_N), jnp.float32, 0.01, 0.24)
    A = Adj + Q                                                 # self.Adj = Adj + Q

    layer_dims = [
        (end_channel, filters[0]),    # E0
        (filters[0], filters[1]),     # E1
        (filters[1], filters[2]),     # E2
        (filters[2], filters[3]),     # E3
        (filters[3], filters[4]),     # ED
        (filters[4], filters[3]),     # D3
        (filters[3], filters[2]),     # D2
        (filters[2], filters[1]),     # D1
        (filters[1], filters[0]),     # D0
        (filters[0], end_channel),    # DD
    ]
    params = init_deep_priors_params(keys[4], layer_dims, c_pad)

    out = deep_priors_forward(ori, acc, A, params, node_n=NODE_N, f_len=F_LEN)
    out = jax.block_until_ready(out)
    assert out.shape == (B, F_LEN, NODE_N, 3), out.shape
    assert bool(jnp.all(jnp.isfinite(out)))

    ref = deep_priors_reference(ori, acc, A, params, node_n=NODE_N, f_len=F_LEN)
    err = float(jnp.max(jnp.abs(out - ref)) / (jnp.max(jnp.abs(ref)) + 1e-6))
    assert err < 3e-2, f"kernel/reference mismatch: {err}"
    print("KERNEL_OK")
</pallas_src>

<mosaic_0001>
module attributes {stable_mosaic.version = 11 : i64} {
  func.func @kernel(%arg0: i32, %arg1: i32, %arg2: memref<16x128xf32, #tpu.memory_space<vmem>>, %arg3: memref<16x16xbf16, #tpu.memory_space<vmem>>, %arg4: memref<1x128x128xbf16, #tpu.memory_space<vmem>>, %arg5: memref<1x1x128xf32, #tpu.memory_space<vmem>>, %arg6: memref<1x1152x128xbf16, #tpu.memory_space<vmem>>, %arg7: memref<1x1x128xf32, #tpu.memory_space<vmem>>, %arg8: memref<16x128xf32, #tpu.memory_space<vmem>>, %arg9: memref<16x128xf32, #tpu.memory_space<vmem>>, %arg10: memref<4x16x128xbf16, #tpu.memory_space<vmem>>) attributes {dimension_semantics = [#tpu.dimension_semantics<parallel>, #tpu.dimension_semantics<arbitrary>], iteration_bounds = array<i64: 2, 10>, scalar_prefetch = 0 : i64, scratch_operands = 2 : i64, tpu.core_type = #tpu.core_type<tc>, window_params = [{transform_indices = @transform_0, window_bounds = array<i64: 16, 128>}, {pipeline_mode = #tpu.pipeline_mode<synchronous>, transform_indices = @transform_1, window_bounds = array<i64: 16, 16>}, {transform_indices = @transform_2, window_bounds = array<i64: 1, 128, 128>}, {transform_indices = @transform_3, window_bounds = array<i64: 1, 1, 128>}, {transform_indices = @transform_4, window_bounds = array<i64: 1, 1152, 128>}, {transform_indices = @transform_5, window_bounds = array<i64: 1, 1, 128>}, {transform_indices = @transform_6, window_bounds = array<i64: 16, 128>}]} {
    %c0_i32 = arith.constant 0 : i32
    %0 = arith.cmpi eq, %arg1, %c0_i32 : i32
    %1 = arith.extui %0 : i1 to i32
    %c0_i32_0 = arith.constant 0 : i32
    %2 = arith.cmpi ne, %1, %c0_i32_0 : i32
    scf.if %2 {
      %c0_109 = arith.constant 0 : index
      %c0_110 = arith.constant 0 : index
      %237 = vector.load %arg2[%c0_109, %c0_110] : memref<16x128xf32, #tpu.memory_space<vmem>>, vector<16x128xf32>
      %c0_111 = arith.constant 0 : index
      %c0_112 = arith.constant 0 : index
      %238 = vector.load %arg9[%c0_111, %c0_112] : memref<16x128xf32, #tpu.memory_space<vmem>>, vector<16x128xf32>
      tpu.vector_store %arg9[%c0_111, %c0_112], %237 {strides = array<i32>} : memref<16x128xf32, #tpu.memory_space<vmem>>, vector<16x128xf32>,
    } else {
    }
    %c0 = arith.constant 0 : index
    %c0_1 = arith.constant 0 : index
    %3 = vector.load %arg9[%c0, %c0_1] : memref<16x128xf32, #tpu.memory_space<vmem>>, vector<16x128xf32>
    %4 = arith.truncf %3 : vector<16x128xf32> to vector<16x128xbf16>
    %c0_2 = arith.constant 0 : index
    %c0_3 = arith.constant 0 : index
    %c0_4 = arith.constant 0 : index
    %5 = vector.load %arg4[%c0_2, %c0_3, %c0_4] : memref<1x128x128xbf16, #tpu.memory_space<vmem>>, vector<1x128x128xbf16>
    %6 = vector.shape_cast %5 : vector<1x128x128xbf16> to vector<128x128xbf16>
    %cst = arith.constant dense<0.000000e+00> : vector<16x128xf32>
    %7 = tpu.matmul %4, %6, %cst {dimension_numbers = #tpu.dot_dimension_numbers<[1], [0], [0], [1], [0, 0, 1, 1], [], []>} : vector<16x128xbf16>, vector<128x128xbf16>, vector<16x128xf32> -> vector<16x128xf32>
    %c0_5 = arith.constant 0 : index
    %c0_6 = arith.constant 0 : index
    %8 = vector.load %arg3[%c0_5, %c0_6] : memref<16x16xbf16, #tpu.memory_space<vmem>>, vector<16x16xbf16>
    %9 = arith.truncf %7 : vector<16x128xf32> to vector<16x128xbf16>
    %cst_7 = arith.constant dense<0.000000e+00> : vector<16x128xf32>
    %10 = tpu.matmul %8, %9, %cst_7 {dimension_numbers = #tpu.dot_dimension_numbers<[1], [0], [0], [1], [0, 0, 1, 1], [], []>} : vector<16x16xbf16>, vector<16x128xbf16>, vector<16x128xf32> -> vector<16x128xf32>
    %c0_8 = arith.constant 0 : index
    %c0_9 = arith.constant 0 : index
    %c0_10 = arith.constant 0 : index
    %11 = vector.load %arg5[%c0_8, %c0_9, %c0_10] : memref<1x1x128xf32, #tpu.memory_space<vmem>>, vector<1x1x128xf32>
    %12 = vector.shape_cast %11 : vector<1x1x128xf32> to vector<1x128xf32>
    %13 = vector.broadcast %12 : vector<1x128xf32> to vector<16x128xf32>
    %14 = arith.addf %10, %13 : vector<16x128xf32>
    %cst_11 = arith.constant 0.999994993 : f32
    %15 = vector.broadcast %cst_11 : f32 to vector<16x128xf32>
    %16 = arith.mulf %14, %15 : vector<16x128xf32>
    %cst_12 = arith.constant 2.000000e+01 : f32
    %17 = vector.broadcast %cst_12 : f32 to vector<16x128xf32>
    %18 = arith.minimumf %16, %17 : vector<16x128xf32>
    %19 = math.exp %18 : vector<16x128xf32>
    %cst_13 = arith.constant 2.000000e+00 : f32
    %20 = vector.broadcast %cst_13 : f32 to vector<16x128xf32>
    %21 = arith.addf %19, %20 : vector<16x128xf32>
    %22 = arith.mulf %19, %21 : vector<16x128xf32>
    %cst_14 = arith.constant 2.000000e+00 : f32
    %23 = vector.broadcast %cst_14 : f32 to vector<16x128xf32>
    %24 = arith.addf %22, %23 : vector<16x128xf32>
    %25 = tpu.reciprocal %24 {approx = true} : vector<16x128xf32> -> vector<16x128xf32>
    %26 = arith.mulf %22, %25 : vector<16x128xf32>
    %27 = arith.mulf %16, %26 : vector<16x128xf32>
    %28 = tpu.iota {dimensions = array<i32: 0>} : vector<16x128xi32>
    %c16_i32 = arith.constant 16 : i32
    %c0_i32_15 = arith.constant 0 : i32
    %29 = arith.cmpi eq, %c16_i32, %c0_i32_15 : i32
    %c1_i32 = arith.constant 1 : i32
    %30 = arith.select %29, %c1_i32, %c16_i32 : i32
    %31 = vector.broadcast %30 : i32 to vector<16x128xi32>
    %32 = arith.remsi %28, %31 : vector<16x128xi32>
    %c0_i32_16 = arith.constant 0 : i32
    %33 = vector.broadcast %c0_i32_16 : i32 to vector<16x128xi32>
    %34 = arith.cmpi ne, %32, %33 : vector<16x128xi32>
    %c0_i32_17 = arith.constant 0 : i32
    %35 = vector.broadcast %c0_i32_17 : i32 to vector<16x128xi32>
    %36 = arith.cmpi slt, %32, %35 : vector<16x128xi32>
    %c0_i32_18 = arith.constant 0 : i32
    %37 = arith.cmpi slt, %30, %c0_i32_18 : i32
    %38 = vector.broadcast %37 : i1 to vector<16x128xi1>
    %39 = vector.broadcast %38 : vector<16x128xi1> to vector<16x128xi1>
    %40 = arith.xori %36, %39 : vector<16x128xi1>
    %41 = arith.andi %40, %34 : vector<16x128xi1>
    %42 = vector.broadcast %30 : i32 to vector<16x128xi32>
    %43 = arith.addi %32, %42 : vector<16x128xi32>
    %44 = arith.select %41, %43, %32 : vector<16x128xi1>, vector<16x128xi32>
    %cst_19 = arith.constant 0.000000e+00 : f32
    %45 = vector.broadcast %cst_19 : f32 to vector<16x128xf32>
    %c4_i32 = arith.constant 4 : i32
    %46 = tpu.dynamic_rotate %27 by %c4_i32 dim 0 : vector<16x128xf32>, i32 -> vector<16x128xf32>
    %c-4_i32 = arith.constant -4 : i32
    %47 = vector.broadcast %c-4_i32 : i32 to vector<16x128xi32>
    %48 = arith.addi %44, %47 : vector<16x128xi32>
    %c0_i32_20 = arith.constant 0 : i32
    %49 = vector.broadcast %c0_i32_20 : i32 to vector<16x128xi32>
    %50 = arith.cmpi sge, %48, %49 : vector<16x128xi32>
    %c-4_i32_21 = arith.constant -4 : i32
    %51 = vector.broadcast %c-4_i32_21 : i32 to vector<16x128xi32>
    %52 = arith.addi %44, %51 : vector<16x128xi32>
    %c16_i32_22 = arith.constant 16 : i32
    %53 = vector.broadcast %c16_i32_22 : i32 to vector<16x128xi32>
    %54 = arith.cmpi slt, %52, %53 : vector<16x128xi32>
    %55 = arith.andi %50, %54 : vector<16x128xi1>
    %cst_23 = arith.constant 0.000000e+00 : f32
    %56 = vector.broadcast %cst_23 : f32 to vector<16x128xf32>
    %57 = arith.select %55, %46, %56 : vector<16x128xi1>, vector<16x128xf32>
    %58 = arith.truncf %57 : vector<16x128xf32> to vector<16x128xbf16>
    %c0_24 = arith.constant 0 : index
    %c0_25 = arith.constant 0 : index
    %c0_26 = arith.constant 0 : index
    %59 = vector.load %arg6[%c0_24, %c0_25, %c0_26] : memref<1x1152x128xbf16, #tpu.memory_space<vmem>>, vector<1x128x128xbf16>
    %60 = vector.shape_cast %59 : vector<1x128x128xbf16> to vector<128x128xbf16>
    %cst_27 = arith.constant dense<0.000000e+00> : vector<16x128xf32>
    %61 = tpu.matmul %58, %60, %cst_27 {dimension_numbers = #tpu.dot_dimension_numbers<[1], [0], [0], [1], [0, 0, 1, 1], [], []>} : vector<16x128xbf16>, vector<128x128xbf16>, vector<16x128xf32> -> vector<16x128xf32>
    %62 = arith.addf %45, %61 : vector<16x128xf32>
    %c3_i32 = arith.constant 3 : i32
    %63 = tpu.dynamic_rotate %27 by %c3_i32 dim 0 : vector<16x128xf32>, i32 -> vector<16x128xf32>
    %c-3_i32 = arith.constant -3 : i32
    %64 = vector.broadcast %c-3_i32 : i32 to vector<16x128xi32>
    %65 = arith.addi %44, %64 : vector<16x128xi32>
    %c0_i32_28 = arith.constant 0 : i32
    %66 = vector.broadcast %c0_i32_28 : i32 to vector<16x128xi32>
    %67 = arith.cmpi sge, %65, %66 : vector<16x128xi32>
    %c-3_i32_29 = arith.constant -3 : i32
    %68 = vector.broadcast %c-3_i32_29 : i32 to vector<16x128xi32>
    %69 = arith.addi %44, %68 : vector<16x128xi32>
    %c16_i32_30 = arith.constant 16 : i32
    %70 = vector.broadcast %c16_i32_30 : i32 to vector<16x128xi32>
    %71 = arith.cmpi slt, %69, %70 : vector<16x128xi32>
    %72 = arith.andi %67, %71 : vector<16x128xi1>
    %cst_31 = arith.constant 0.000000e+00 : f32
    %73 = vector.broadcast %cst_31 : f32 to vector<16x128xf32>
    %74 = arith.select %72, %63, %73 : vector<16x128xi1>, vector<16x128xf32>
    %75 = arith.truncf %74 : vector<16x128xf32> to vector<16x128xbf16>
    %c0_32 = arith.constant 0 : index
    %c128 = arith.constant 128 : index
    %c0_33 = arith.constant 0 : index
    %76 = vector.load %arg6[%c0_32, %c128, %c0_33] : memref<1x1152x128xbf16, #tpu.memory_space<vmem>>, vector<1x128x128xbf16>
    %77 = vector.shape_cast %76 : vector<1x128x128xbf16> to vector<128x128xbf16>
    %cst_34 = arith.constant dense<0.000000e+00> : vector<16x128xf32>
    %78 = tpu.matmul %75, %77, %cst_34 {dimension_numbers = #tpu.dot_dimension_numbers<[1], [0], [0], [1], [0, 0, 1, 1], [], []>} : vector<16x128xbf16>, vector<128x128xbf16>, vector<16x128xf32> -> vector<16x128xf32>
    %79 = arith.addf %62, %78 : vector<16x128xf32>
    %c2_i32 = arith.constant 2 : i32
    %80 = tpu.dynamic_rotate %27 by %c2_i32 dim 0 : vector<16x128xf32>, i32 -> vector<16x128xf32>
    %c-2_i32 = arith.constant -2 : i32
    %81 = vector.broadcast %c-2_i32 : i32 to vector<16x128xi32>
    %82 = arith.addi %44, %81 : vector<16x128xi32>
    %c0_i32_35 = arith.constant 0 : i32
    %83 = vector.broadcast %c0_i32_35 : i32 to vector<16x128xi32>
    %84 = arith.cmpi sge, %82, %83 : vector<16x128xi32>
    %c-2_i32_36 = arith.constant -2 : i32
    %85 = vector.broadcast %c-2_i32_36 : i32 to vector<16x128xi32>
    %86 = arith.addi %44, %85 : vector<16x128xi32>
    %c16_i32_37 = arith.constant 16 : i32
    %87 = vector.broadcast %c16_i32_37 : i32 to vector<16x128xi32>
    %88 = arith.cmpi slt, %86, %87 : vector<16x128xi32>
    %89 = arith.andi %84, %88 : vector<16x128xi1>
    %cst_38 = arith.constant 0.000000e+00 : f32
    %90 = vector.broadcast %cst_38 : f32 to vector<16x128xf32>
    %91 = arith.select %89, %80, %90 : vector<16x128xi1>, vector<16x128xf32>
    %92 = arith.truncf %91 : vector<16x128xf32> to vector<16x128xbf16>
    %c0_39 = arith.constant 0 : index
    %c256 = arith.constant 256 : index
    %c0_40 = arith.constant 0 : index
    %93 = vector.load %arg6[%c0_39, %c256, %c0_40] : memref<1x1152x128xbf16, #tpu.memory_space<vmem>>, vector<1x128x128xbf16>
    %94 = vector.shape_cast %93 : vector<1x128x128xbf16> to vector<128x128xbf16>
    %cst_41 = arith.constant dense<0.000000e+00> : vector<16x128xf32>
    %95 = tpu.matmul %92, %94, %cst_41 {dimension_numbers = #tpu.dot_dimension_numbers<[1], [0], [0], [1], [0, 0, 1, 1], [], []>} : vector<16x128xbf16>, vector<128x128xbf16>, vector<16x128xf32> -> vector<16x128xf32>
    %96 = arith.addf %79, %95 : vector<16x128xf32>
    %c1_i32_42 = arith.constant 1 : i32
    %97 = tpu.dynamic_rotate %27 by %c1_i32_42 dim 0 : vector<16x128xf32>, i32 -> vector<16x128xf32>
    %c-1_i32 = arith.constant -1 : i32
    %98 = vector.broadcast %c-1_i32 : i32 to vector<16x128xi32>
    %99 = arith.addi %44, %98 : vector<16x128xi32>
    %c0_i32_43 = arith.constant 0 : i32
    %100 = vector.broadcast %c0_i32_43 : i32 to vector<16x128xi32>
    %101 = arith.cmpi sge, %99, %100 : vector<16x128xi32>
    %c-1_i32_44 = arith.constant -1 : i32
    %102 = vector.broadcast %c-1_i32_44 : i32 to vector<16x128xi32>
    %103 = arith.addi %44, %102 : vector<16x128xi32>
    %c16_i32_45 = arith.constant 16 : i32
    %104 = vector.broadcast %c16_i32_45 : i32 to vector<16x128xi32>
    %105 = arith.cmpi slt, %103, %104 : vector<16x128xi32>
    %106 = arith.andi %101, %105 : vector<16x128xi1>
    %cst_46 = arith.constant 0.000000e+00 : f32
    %107 = vector.broadcast %cst_46 : f32 to vector<16x128xf32>
    %108 = arith.select %106, %97, %107 : vector<16x128xi1>, vector<16x128xf32>
    %109 = arith.truncf %108 : vector<16x128xf32> to vector<16x128xbf16>
    %c0_47 = arith.constant 0 : index
    %c384 = arith.constant 384 : index
    %c0_48 = arith.constant 0 : index
    %110 = vector.load %arg6[%c0_47, %c384, %c0_48] : memref<1x1152x128xbf16, #tpu.memory_space<vmem>>, vector<1x128x128xbf16>
    %111 = vector.shape_cast %110 : vector<1x128x128xbf16> to vector<128x128xbf16>
    %cst_49 = arith.constant dense<0.000000e+00> : vector<16x128xf32>
    %112 = tpu.matmul %109, %111, %cst_49 {dimension_numbers = #tpu.dot_dimension_numbers<[1], [0], [0], [1], [0, 0, 1, 1], [], []>} : vector<16x128xbf16>, vector<128x128xbf16>, vector<16x128xf32> -> vector<16x128xf32>
    %113 = arith.addf %96, %112 : vector<16x128xf32>
    %c0_i32_50 = arith.constant 0 : i32
    %114 = vector.broadcast %c0_i32_50 : i32 to vector<16x128xi32>
    %115 = arith.addi %44, %114 : vector<16x128xi32>
    %c0_i32_51 = arith.constant 0 : i32
    %116 = vector.broadcast %c0_i32_51 : i32 to vector<16x128xi32>
    %117 = arith.cmpi sge, %115, %116 : vector<16x128xi32>
    %c0_i32_52 = arith.constant 0 : i32
    %118 = vector.broadcast %c0_i32_52 : i32 to vector<16x128xi32>
    %119 = arith.addi %44, %118 : vector<16x128xi32>
    %c16_i32_53 = arith.constant 16 : i32
    %120 = vector.broadcast %c16_i32_53 : i32 to vector<16x128xi32>
    %121 = arith.cmpi slt, %119, %120 : vector<16x128xi32>
    %122 = arith.andi %117, %121 : vector<16x128xi1>
    %cst_54 = arith.constant 0.000000e+00 : f32
    %123 = vector.broadcast %cst_54 : f32 to vector<16x128xf32>
    %124 = arith.select %122, %27, %123 : vector<16x128xi1>, vector<16x128xf32>
    %125 = arith.truncf %124 : vector<16x128xf32> to vector<16x128xbf16>
    %c0_55 = arith.constant 0 : index
    %c512 = arith.constant 512 : index
    %c0_56 = arith.constant 0 : index
    %126 = vector.load %arg6[%c0_55, %c512, %c0_56] : memref<1x1152x128xbf16, #tpu.memory_space<vmem>>, vector<1x128x128xbf16>
    %127 = vector.shape_cast %126 : vector<1x128x128xbf16> to vector<128x128xbf16>
    %cst_57 = arith.constant dense<0.000000e+00> : vector<16x128xf32>
    %128 = tpu.matmul %125, %127, %cst_57 {dimension_numbers = #tpu.dot_dimension_numbers<[1], [0], [0], [1], [0, 0, 1, 1], [], []>} : vector<16x128xbf16>, vector<128x128xbf16>, vector<16x128xf32> -> vector<16x128xf32>
    %129 = arith.addf %113, %128 : vector<16x128xf32>
    %c15_i32 = arith.constant 15 : i32
    %130 = tpu.dynamic_rotate %27 by %c15_i32 dim 0 : vector<16x128xf32>, i32 -> vector<16x128xf32>
    %c1_i32_58 = arith.constant 1 : i32
    %131 = vector.broadcast %c1_i32_58 : i32 to vector<16x128xi32>
    %132 = arith.addi %44, %131 : vector<16x128xi32>
    %c0_i32_59 = arith.constant 0 : i32
    %133 = vector.broadcast %c0_i32_59 : i32 to vector<16x128xi32>
    %134 = arith.cmpi sge, %132, %133 : vector<16x128xi32>
    %c1_i32_60 = arith.constant 1 : i32
    %135 = vector.broadcast %c1_i32_60 : i32 to vector<16x128xi32>
    %136 = arith.addi %44, %135 : vector<16x128xi32>
    %c16_i32_61 = arith.constant 16 : i32
    %137 = vector.broadcast %c16_i32_61 : i32 to vector<16x128xi32>
    %138 = arith.cmpi slt, %136, %137 : vector<16x128xi32>
    %139 = arith.andi %134, %138 : vector<16x128xi1>
    %cst_62 = arith.constant 0.000000e+00 : f32
    %140 = vector.broadcast %cst_62 : f32 to vector<16x128xf32>
    %141 = arith.select %139, %130, %140 : vector<16x128xi1>, vector<16x128xf32>
    %142 = arith.truncf %141 : vector<16x128xf32> to vector<16x128xbf16>
    %c0_63 = arith.constant 0 : index
    %c640 = arith.constant 640 : index
    %c0_64 = arith.constant 0 : index
    %143 = vector.load %arg6[%c0_63, %c640, %c0_64] : memref<1x1152x128xbf16, #tpu.memory_space<vmem>>, vector<1x128x128xbf16>
    %144 = vector.shape_cast %143 : vector<1x128x128xbf16> to vector<128x128xbf16>
    %cst_65 = arith.constant dense<0.000000e+00> : vector<16x128xf32>
    %145 = tpu.matmul %142, %144, %cst_65 {dimension_numbers = #tpu.dot_dimension_numbers<[1], [0], [0], [1], [0, 0, 1, 1], [], []>} : vector<16x128xbf16>, vector<128x128xbf16>, vector<16x128xf32> -> vector<16x128xf32>
    %146 = arith.addf %129, %145 : vector<16x128xf32>
    %c14_i32 = arith.constant 14 : i32
    %147 = tpu.dynamic_rotate %27 by %c14_i32 dim 0 : vector<16x128xf32>, i32 -> vector<16x128xf32>
    %c2_i32_66 = arith.constant 2 : i32
    %148 = vector.broadcast %c2_i32_66 : i32 to vector<16x128xi32>
    %149 = arith.addi %44, %148 : vector<16x128xi32>
    %c0_i32_67 = arith.constant 0 : i32
    %150 = vector.broadcast %c0_i32_67 : i32 to vector<16x128xi32>
    %151 = arith.cmpi sge, %149, %150 : vector<16x128xi32>
    %c2_i32_68 = arith.constant 2 : i32
    %152 = vector.broadcast %c2_i32_68 : i32 to vector<16x128xi32>
    %153 = arith.addi %44, %152 : vector<16x128xi32>
    %c16_i32_69 = arith.constant 16 : i32
    %154 = vector.broadcast %c16_i32_69 : i32 to vector<16x128xi32>
    %155 = arith.cmpi slt, %153, %154 : vector<16x128xi32>
    %156 = arith.andi %151, %155 : vector<16x128xi1>
    %cst_70 = arith.constant 0.000000e+00 : f32
    %157 = vector.broadcast %cst_70 : f32 to vector<16x128xf32>
    %158 = arith.select %156, %147, %157 : vector<16x128xi1>, vector<16x128xf32>
    %159 = arith.truncf %158 : vector<16x128xf32> to vector<16x128xbf16>
    %c0_71 = arith.constant 0 : index
    %c768 = arith.constant 768 : index
    %c0_72 = arith.constant 0 : index
    %160 = vector.load %arg6[%c0_71, %c768, %c0_72] : memref<1x1152x128xbf16, #tpu.memory_space<vmem>>, vector<1x128x128xbf16>
    %161 = vector.shape_cast %160 : vector<1x128x128xbf16> to vector<128x128xbf16>
    %cst_73 = arith.constant dense<0.000000e+00> : vector<16x128xf32>
    %162 = tpu.matmul %159, %161, %cst_73 {dimension_numbers = #tpu.dot_dimension_numbers<[1], [0], [0], [1], [0, 0, 1, 1], [], []>} : vector<16x128xbf16>, vector<128x128xbf16>, vector<16x128xf32> -> vector<16x128xf32>
    %163 = arith.addf %146, %162 : vector<16x128xf32>
    %c13_i32 = arith.constant 13 : i32
    %164 = tpu.dynamic_rotate %27 by %c13_i32 dim 0 : vector<16x128xf32>, i32 -> vector<16x128xf32>
    %c3_i32_74 = arith.constant 3 : i32
    %165 = vector.broadcast %c3_i32_74 : i32 to vector<16x128xi32>
    %166 = arith.addi %44, %165 : vector<16x128xi32>
    %c0_i32_75 = arith.constant 0 : i32
    %167 = vector.broadcast %c0_i32_75 : i32 to vector<16x128xi32>
    %168 = arith.cmpi sge, %166, %167 : vector<16x128xi32>
    %c3_i32_76 = arith.constant 3 : i32
    %169 = vector.broadcast %c3_i32_76 : i32 to vector<16x128xi32>
    %170 = arith.addi %44, %169 : vector<16x128xi32>
    %c16_i32_77 = arith.constant 16 : i32
    %171 = vector.broadcast %c16_i32_77 : i32 to vector<16x128xi32>
    %172 = arith.cmpi slt, %170, %171 : vector<16x128xi32>
    %173 = arith.andi %168, %172 : vector<16x128xi1>
    %cst_78 = arith.constant 0.000000e+00 : f32
    %174 = vector.broadcast %cst_78 : f32 to vector<16x128xf32>
    %175 = arith.select %173, %164, %174 : vector<16x128xi1>, vector<16x128xf32>
    %176 = arith.truncf %175 : vector<16x128xf32> to vector<16x128xbf16>
    %c0_79 = arith.constant 0 : index
    %c896 = arith.constant 896 : index
    %c0_80 = arith.constant 0 : index
    %177 = vector.load %arg6[%c0_79, %c896, %c0_80] : memref<1x1152x128xbf16, #tpu.memory_space<vmem>>, vector<1x128x128xbf16>
    %178 = vector.shape_cast %177 : vector<1x128x128xbf16> to vector<128x128xbf16>
    %cst_81 = arith.constant dense<0.000000e+00> : vector<16x128xf32>
    %179 = tpu.matmul %176, %178, %cst_81 {dimension_numbers = #tpu.dot_dimension_numbers<[1], [0], [0], [1], [0, 0, 1, 1], [], []>} : vector<16x128xbf16>, vector<128x128xbf16>, vector<16x128xf32> -> vector<16x128xf32>
    %180 = arith.addf %163, %179 : vector<16x128xf32>
    %c12_i32 = arith.constant 12 : i32
    %181 = tpu.dynamic_rotate %27 by %c12_i32 dim 0 : vector<16x128xf32>, i32 -> vector<16x128xf32>
    %c4_i32_82 = arith.constant 4 : i32
    %182 = vector.broadcast %c4_i32_82 : i32 to vector<16x128xi32>
    %183 = arith.addi %44, %182 : vector<16x128xi32>
    %c0_i32_83 = arith.constant 0 : i32
    %184 = vector.broadcast %c0_i32_83 : i32 to vector<16x128xi32>
    %185 = arith.cmpi sge, %183, %184 : vector<16x128xi32>
    %c4_i32_84 = arith.constant 4 : i32
    %186 = vector.broadcast %c4_i32_84 : i32 to vector<16x128xi32>
    %187 = arith.addi %44, %186 : vector<16x128xi32>
    %c16_i32_85 = arith.constant 16 : i32
    %188 = vector.broadcast %c16_i32_85 : i32 to vector<16x128xi32>
    %189 = arith.cmpi slt, %187, %188 : vector<16x128xi32>
    %190 = arith.andi %185, %189 : vector<16x128xi1>
    %cst_86 = arith.constant 0.000000e+00 : f32
    %191 = vector.broadcast %cst_86 : f32 to vector<16x128xf32>
    %192 = arith.select %190, %181, %191 : vector<16x128xi1>, vector<16x128xf32>
    %193 = arith.truncf %192 : vector<16x128xf32> to vector<16x128xbf16>
    %c0_87 = arith.constant 0 : index
    %c1024 = arith.constant 1024 : index
    %c0_88 = arith.constant 0 : index
    %194 = vector.load %arg6[%c0_87, %c1024, %c0_88] : memref<1x1152x128xbf16, #tpu.memory_space<vmem>>, vector<1x128x128xbf16>
    %195 = vector.shape_cast %194 : vector<1x128x128xbf16> to vector<128x128xbf16>
    %cst_89 = arith.constant dense<0.000000e+00> : vector<16x128xf32>
    %196 = tpu.matmul %193, %195, %cst_89 {dimension_numbers = #tpu.dot_dimension_numbers<[1], [0], [0], [1], [0, 0, 1, 1], [], []>} : vector<16x128xbf16>, vector<128x128xbf16>, vector<16x128xf32> -> vector<16x128xf32>
    %197 = arith.addf %180, %196 : vector<16x128xf32>
    %c0_90 = arith.constant 0 : index
    %c0_91 = arith.constant 0 : index
    %c0_92 = arith.constant 0 : index
    %198 = vector.load %arg7[%c0_90, %c0_91, %c0_92] : memref<1x1x128xf32, #tpu.memory_space<vmem>>, vector<1x1x128xf32>
    %199 = vector.shape_cast %198 : vector<1x1x128xf32> to vector<1x128xf32>
    %200 = vector.broadcast %199 : vector<1x128xf32> to vector<16x128xf32>
    %201 = arith.addf %197, %200 : vector<16x128xf32>
    %202 = arith.addf %201, %14 : vector<16x128xf32>
    %c4_i32_93 = arith.constant 4 : i32
    %203 = arith.cmpi sgt, %arg1, %c4_i32_93 : i32
    %c8_i32 = arith.constant 8 : i32
    %204 = arith.cmpi sle, %arg1, %c8_i32 : i32
    %205 = arith.andi %203, %204 : i1
    %c9_i32 = arith.constant 9 : i32
    %206 = arith.cmpi eq, %arg1, %c9_i32 : i32
    %207 = arith.ori %205, %206 : i1
    %true = arith.constant true
    %208 = arith.xori %207, %true : i1
    %209 = arith.extui %208 : i1 to i32
    %c0_i32_94 = arith.constant 0 : i32
    %210 = arith.cmpi ne, %209, %c0_i32_94 : i32
    scf.if %210 {
      %c0_109 = arith.constant 0 : index
      %c0_110 = arith.constant 0 : index
      %237 = vector.load %arg9[%c0_109, %c0_110] : memref<16x128xf32, #tpu.memory_space<vmem>>, vector<16x128xf32>
      tpu.vector_store %arg9[%c0_109, %c0_110], %202 {strides = array<i32>} : memref<16x128xf32, #tpu.memory_space<vmem>>, vector<16x128xf32>,
    } else {
    }
    %c0_i32_95 = arith.constant 0 : i32
    %211 = arith.cmpi eq, %arg1, %c0_i32_95 : i32
    %212 = arith.extui %211 : i1 to i32
    %c0_i32_96 = arith.constant 0 : i32
    %213 = arith.cmpi ne, %212, %c0_i32_96 : i32
    scf.if %213 {
      %237 = arith.truncf %202 : vector<16x128xf32> to vector<16x128xbf16>
      %c0_109 = arith.constant 0 : index
      %c0_110 = arith.constant 0 : index
      %c0_111 = arith.constant 0 : index
      %238 = vector.load %arg10[%c0_109, %c0_110, %c0_111] : memref<4x16x128xbf16, #tpu.memory_space<vmem>>, vector<1x16x128xbf16>
      %239 = vector.shape_cast %238 : vector<1x16x128xbf16> to vector<16x128xbf16>
      %240 = vector.shape_cast %237 : vector<16x128xbf16> to vector<1x16x128xbf16>
      tpu.vector_store %arg10[%c0_109, %c0_110, %c0_111], %240 {strides = array<i32>} : memref<4x16x128xbf16, #tpu.memory_space<vmem>>, vector<1x16x128xbf16>,
    } else {
    }
    %c1_i32_97 = arith.constant 1 : i32
    %214 = arith.cmpi eq, %arg1, %c1_i32_97 : i32
    %215 = arith.extui %214 : i1 to i32
    %c0_i32_98 = arith.constant 0 : i32
    %216 = arith.cmpi ne, %215, %c0_i32_98 : i32
    scf.if %216 {
      %237 = arith.truncf %202 : vector<16x128xf32> to vector<16x128xbf16>
      %c1 = arith.constant 1 : index
      %c0_109 = arith.constant 0 : index
      %c0_110 = arith.constant 0 : index
      %238 = vector.load %arg10[%c1, %c0_109, %c0_110] : memref<4x16x128xbf16, #tpu.memory_space<vmem>>, vector<1x16x128xbf16>
      %239 = vector.shape_cast %238 : vector<1x16x128xbf16> to vector<16x128xbf16>
      %240 = vector.shape_cast %237 : vector<16x128xbf16> to vector<1x16x128xbf16>
      tpu.vector_store %arg10[%c1, %c0_109, %c0_110], %240 {strides = array<i32>} : memref<4x16x128xbf16, #tpu.memory_space<vmem>>, vector<1x16x128xbf16>,
    } else {
    }
    %c2_i32_99 = arith.constant 2 : i32
    %217 = arith.cmpi eq, %arg1, %c2_i32_99 : i32
    %218 = arith.extui %217 : i1 to i32
    %c0_i32_100 = arith.constant 0 : i32
    %219 = arith.cmpi ne, %218, %c0_i32_100 : i32
    scf.if %219 {
      %237 = arith.truncf %202 : vector<16x128xf32> to vector<16x128xbf16>
      %c2 = arith.constant 2 : index
      %c0_109 = arith.constant 0 : index
      %c0_110 = arith.constant 0 : index
      %238 = vector.load %arg10[%c2, %c0_109, %c0_110] : memref<4x16x128xbf16, #tpu.memory_space<vmem>>, vector<1x16x128xbf16>
      %239 = vector.shape_cast %238 : vector<1x16x128xbf16> to vector<16x128xbf16>
      %240 = vector.shape_cast %237 : vector<16x128xbf16> to vector<1x16x128xbf16>
      tpu.vector_store %arg10[%c2, %c0_109, %c0_110], %240 {strides = array<i32>} : memref<4x16x128xbf16, #tpu.memory_space<vmem>>, vector<1x16x128xbf16>,
    } else {
    }
    %c3_i32_101 = arith.constant 3 : i32
    %220 = arith.cmpi eq, %arg1, %c3_i32_101 : i32
    %221 = arith.extui %220 : i1 to i32
    %c0_i32_102 = arith.constant 0 : i32
    %222 = arith.cmpi ne, %221, %c0_i32_102 : i32
    scf.if %222 {
      %237 = arith.truncf %202 : vector<16x128xf32> to vector<16x128xbf16>
      %c3 = arith.constant 3 : index
      %c0_109 = arith.constant 0 : index
      %c0_110 = arith.constant 0 : index
      %238 = vector.load %arg10[%c3, %c0_109, %c0_110] : memref<4x16x128xbf16, #tpu.memory_space<vmem>>, vector<1x16x128xbf16>
      %239 = vector.shape_cast %238 : vector<1x16x128xbf16> to vector<16x128xbf16>
      %240 = vector.shape_cast %237 : vector<16x128xbf16> to vector<1x16x128xbf16>
      tpu.vector_store %arg10[%c3, %c0_109, %c0_110], %240 {strides = array<i32>} : memref<4x16x128xbf16, #tpu.memory_space<vmem>>, vector<1x16x128xbf16>,
    } else {
    }
    %c5_i32 = arith.constant 5 : i32
    %223 = arith.cmpi eq, %arg1, %c5_i32 : i32
    %224 = arith.extui %223 : i1 to i32
    %c0_i32_103 = arith.constant 0 : i32
    %225 = arith.cmpi ne, %224, %c0_i32_103 : i32
    scf.if %225 {
      %c3 = arith.constant 3 : index
      %c0_109 = arith.constant 0 : index
      %c0_110 = arith.constant 0 : index
      %237 = vector.load %arg10[%c3, %c0_109, %c0_110] : memref<4x16x128xbf16, #tpu.memory_space<vmem>>, vector<1x16x128xbf16>
      %238 = vector.shape_cast %237 : vector<1x16x128xbf16> to vector<16x128xbf16>
      %239 = arith.extf %238 : vector<16x128xbf16> to vector<16x128xf32>
      %240 = arith.addf %202, %239 : vector<16x128xf32>
      %c0_111 = arith.constant 0 : index
      %c0_112 = arith.constant 0 : index
      %241 = vector.load %arg9[%c0_111, %c0_112] : memref<16x128xf32, #tpu.memory_space<vmem>>, vector<16x128xf32>
      tpu.vector_store %arg9[%c0_111, %c0_112], %240 {strides = array<i32>} : memref<16x128xf32, #tpu.memory_space<vmem>>, vector<16x128xf32>,
    } else {
    }
    %c6_i32 = arith.constant 6 : i32
    %226 = arith.cmpi eq, %arg1, %c6_i32 : i32
    %227 = arith.extui %226 : i1 to i32
    %c0_i32_104 = arith.constant 0 : i32
    %228 = arith.cmpi ne, %227, %c0_i32_104 : i32
    scf.if %228 {
      %c2 = arith.constant 2 : index
      %c0_109 = arith.constant 0 : index
      %c0_110 = arith.constant 0 : index
      %237 = vector.load %arg10[%c2, %c0_109, %c0_110] : memref<4x16x128xbf16, #tpu.memory_space<vmem>>, vector<1x16x128xbf16>
      %238 = vector.shape_cast %237 : vector<1x16x128xbf16> to vector<16x128xbf16>
      %239 = arith.extf %238 : vector<16x128xbf16> to vector<16x128xf32>
      %240 = arith.addf %202, %239 : vector<16x128xf32>
      %c0_111 = arith.constant 0 : index
      %c0_112 = arith.constant 0 : index
      %241 = vector.load %arg9[%c0_111, %c0_112] : memref<16x128xf32, #tpu.memory_space<vmem>>, vector<16x128xf32>
      tpu.vector_store %arg9[%c0_111, %c0_112], %240 {strides = array<i32>} : memref<16x128xf32, #tpu.memory_space<vmem>>, vector<16x128xf32>,
    } else {
    }
    %c7_i32 = arith.constant 7 : i32
    %229 = arith.cmpi eq, %arg1, %c7_i32 : i32
    %230 = arith.extui %229 : i1 to i32
    %c0_i32_105 = arith.constant 0 : i32
    %231 = arith.cmpi ne, %230, %c0_i32_105 : i32
    scf.if %231 {
      %c1 = arith.constant 1 : index
      %c0_109 = arith.constant 0 : index
      %c0_110 = arith.constant 0 : index
      %237 = vector.load %arg10[%c1, %c0_109, %c0_110] : memref<4x16x128xbf16, #tpu.memory_space<vmem>>, vector<1x16x128xbf16>
      %238 = vector.shape_cast %237 : vector<1x16x128xbf16> to vector<16x128xbf16>
      %239 = arith.extf %238 : vector<16x128xbf16> to vector<16x128xf32>
      %240 = arith.addf %202, %239 : vector<16x128xf32>
      %c0_111 = arith.constant 0 : index
      %c0_112 = arith.constant 0 : index
      %241 = vector.load %arg9[%c0_111, %c0_112] : memref<16x128xf32, #tpu.memory_space<vmem>>, vector<16x128xf32>
      tpu.vector_store %arg9[%c0_111, %c0_112], %240 {strides = array<i32>} : memref<16x128xf32, #tpu.memory_space<vmem>>, vector<16x128xf32>,
    } else {
    }
    %c8_i32_106 = arith.constant 8 : i32
    %232 = arith.cmpi eq, %arg1, %c8_i32_106 : i32
    %233 = arith.extui %232 : i1 to i32
    %c0_i32_107 = arith.constant 0 : i32
    %234 = arith.cmpi ne, %233, %c0_i32_107 : i32
    scf.if %234 {
      %c0_109 = arith.constant 0 : index
      %c0_110 = arith.constant 0 : index
      %c0_111 = arith.constant 0 : index
      %237 = vector.load %arg10[%c0_109, %c0_110, %c0_111] : memref<4x16x128xbf16, #tpu.memory_space<vmem>>, vector<1x16x128xbf16>
      %238 = vector.shape_cast %237 : vector<1x16x128xbf16> to vector<16x128xbf16>
      %239 = arith.extf %238 : vector<16x128xbf16> to vector<16x128xf32>
      %240 = arith.addf %202, %239 : vector<16x128xf32>
      %c0_112 = arith.constant 0 : index
      %c0_113 = arith.constant 0 : index
      %241 = vector.load %arg9[%c0_112, %c0_113] : memref<16x128xf32, #tpu.memory_space<vmem>>, vector<16x128xf32>
      tpu.vector_store %arg9[%c0_112, %c0_113], %240 {strides = array<i32>} : memref<16x128xf32, #tpu.memory_space<vmem>>, vector<16x128xf32>,
    } else {
    }
    %235 = arith.extui %206 : i1 to i32
    %c0_i32_108 = arith.constant 0 : i32
    %236 = arith.cmpi ne, %235, %c0_i32_108 : i32
    scf.if %236 {
      %c0_109 = arith.constant 0 : index
      %c0_110 = arith.constant 0 : index
      %237 = vector.load %arg8[%c0_109, %c0_110] : memref<16x128xf32, #tpu.memory_space<vmem>>, vector<16x128xf32>
      tpu.vector_store %arg8[%c0_109, %c0_110], %202 {strides = array<i32>} : memref<16x128xf32, #tpu.memory_space<vmem>>, vector<16x128xf32>,
    } else {
    }
    return
  }
  func.func @transform_0(%arg0: i32, %arg1: i32) -> (i32, i32) {
    %c0_i32 = arith.constant 0 : i32
    %c0_i32_0 = arith.constant 0 : i32
    return %arg0, %c0_i32 : i32, i32
  }
  func.func @transform_1(%arg0: i32, %arg1: i32) -> (i32, i32) {
    %c0_i32 = arith.constant 0 : i32
    %c0_i32_0 = arith.constant 0 : i32
    %c0_i32_1 = arith.constant 0 : i32
    return %c0_i32, %c0_i32_0 : i32, i32
  }
  func.func @transform_2(%arg0: i32, %arg1: i32) -> (i32, i32, i32) {
    %c0_i32 = arith.constant 0 : i32
    %c0_i32_0 = arith.constant 0 : i32
    %c0_i32_1 = arith.constant 0 : i32
    return %arg1, %c0_i32, %c0_i32_0 : i32, i32, i32
  }
  func.func @transform_3(%arg0: i32, %arg1: i32) -> (i32, i32, i32) {
    %c0_i32 = arith.constant 0 : i32
    %c0_i32_0 = arith.constant 0 : i32
    %c0_i32_1 = arith.constant 0 : i32
    return %arg1, %c0_i32, %c0_i32_0 : i32, i32, i32
  }
  func.func @transform_4(%arg0: i32, %arg1: i32) -> (i32, i32, i32) {
    %c0_i32 = arith.constant 0 : i32
    %c0_i32_0 = arith.constant 0 : i32
    %c0_i32_1 = arith.constant 0 : i32
    return %arg1, %c0_i32, %c0_i32_0 : i32, i32, i32
  }
  func.func @transform_5(%arg0: i32, %arg1: i32) -> (i32, i32, i32) {
    %c0_i32 = arith.constant 0 : i32
    %c0_i32_0 = arith.constant 0 : i32
    %c0_i32_1 = arith.constant 0 : i32
    return %arg1, %c0_i32, %c0_i32_0 : i32, i32, i32
  }
  func.func @transform_6(%arg0: i32, %arg1: i32) -> (i32, i32) {
    %c0_i32 = arith.constant 0 : i32
    %c0_i32_0 = arith.constant 0 : i32
    return %arg0, %c0_i32 : i32, i32
  }
}

</mosaic_0001>

<llo_original>
// kernel: tpu_custom_call.1
$region0: #{tpu_custom_call.1}
  #allocation0 [shape = 'u32[]', space=smem, size = 0x4, offset = 0x4, fixed_abs, tag = 'smem constant byte address 0x4 - core index']
  #allocation1 [shape = 'u32[144,128]{1,0:T(1,128)}', space=vmem, size = 0x12000, scoped, tag = 'internal scratch']
  #allocation2 [shape = 'f32[16,128]{1,0:T(8,128)}', space=vmem, size = 0x2000, scoped, tag = 'scratch operand']
  #allocation3 [shape = 'bf16[4,16,128]{2,1,0:T(16,128)(2,1)}', space=vmem, size = 0x4000, scoped, tag = 'scratch operand']
  %s0 = inlined_call_operand.hbm [shape: f32[32,128], index: 0, kind: input, shape index: {}]
  %s1 = inlined_call_operand.hbm [shape: bf16[16,16], index: 1, kind: input, shape index: {}]
  %s2 = inlined_call_operand.hbm [shape: bf16[10,128,128], index: 2, kind: input, shape index: {}]
  %s3 = inlined_call_operand.hbm [shape: f32[10,1,128], index: 3, kind: input, shape index: {}]
  %s4 = inlined_call_operand.hbm [shape: bf16[10,1152,128], index: 4, kind: input, shape index: {}]
  %s5 = inlined_call_operand.hbm [shape: f32[10,1,128], index: 5, kind: input, shape index: {}]
  %s6 = inlined_call_operand.hbm [shape: f32[32,128], index: 6, kind: output, shape index: {}]
  %s7 = sld [smem:[#allocation0]]
  $region125: #{tpu_custom_call.1} parent=0
    _
  %s9 = ssub.s32 1, %s7
  %s10 = scalar_select 0, %s9, %s7
  $region1: #{tpu_custom_call.1} parent=0
    #allocation4 [shape = 'u8[16384]{0}', space=vmem, size = 0x4000, scoped, tag = 'input window, operand 0']
    #allocation5 [shape = 's32[2]{0}', space=sflag, size = 0x8, scoped, tag = 'scoped memory for tpu_custom_call.1']
    #allocation6 [shape = 's32[2]{0}', space=sflag, size = 0x8, scoped, tag = 'scoped memory for tpu_custom_call.1']
    #allocation7 [shape = 'u8[4096]{0}', space=vmem, size = 0x1000, scoped, tag = 'input window, operand 1, single buffered']
    #allocation8 [shape = 's32[1]{0}', space=sflag, size = 0x4, scoped, tag = 'scoped memory for tpu_custom_call.1']
    #allocation9 [shape = 'u8[65536]{0}', space=vmem, size = 0x10000, scoped, tag = 'input window, operand 2']
    #allocation10 [shape = 'u8[1024]{0}', space=vmem, size = 0x400, scoped, tag = 'input window, operand 3']
    #allocation11 [shape = 'u8[589824]{0}', space=vmem, size = 0x90000, scoped, tag = 'input window, operand 4']
    #allocation12 [shape = 'u8[1024]{0}', space=vmem, size = 0x400, scoped, tag = 'input window, operand 5']
    #allocation13 [shape = 'u8[16384]{0}', space=vmem, size = 0x4000, scoped, tag = 'output window, operand 0']
    %11 = vsyncpa [#allocation5], 0
    %s12 = scalar_lea.sflag [#allocation5], 1
    %13 = vsyncpa %s12, 0
    %14 = vsyncpa [#allocation8], 0
    %15 = vsyncpa [#allocation6], 0
    %s16 = scalar_lea.sflag [#allocation6], 1
    %17 = vsyncpa %s16, 0
    loop: start=0, step=1, limit=22
    $region2: #{tpu_custom_call.1} parent=1 // loop_pre_header
      _
    $region3: #{tpu_custom_call.1} parent=1 // loop_header
      %s19 = sphi 0, %s23
      %p20 = scmp.ge.s32.totalorder %s19, 22
      %s26 = sphi 0, %s38
      %s27 = sphi 0, %s34
      %s28 = sphi 0, %s26
      %s29 = sphi 0, %s27
      %s30 = sphi 0, %s28
      %s31 = sphi 0, %s29
      %s41 = sphi 0, %s43
      %s44 = sphi 0, %s41
      %s45 = sphi 0, %s44
      %s61 = sphi 0, %s45
      %s65 = sphi 0, %s65
      %s67 = sphi 0, %s65
      %s68 = sphi 0, %s67
      %s82 = sphi 0, %s68
      %s88 = sphi 0, %s90
      %s91 = sphi 0, %s88
      %s92 = sphi 0, %s91
      %s108 = sphi 0, %s92
      %s114 = sphi 0, %s116
      %s117 = sphi 0, %s114
      %s118 = sphi 0, %s117
      %s134 = sphi 0, %s118
      %s140 = sphi 0, %s142
      %s143 = sphi 0, %s140
      %s144 = sphi 0, %s143
      %s160 = sphi 0, %s144
      %s166 = sphi 0, %s168
      %s169 = sphi 0, %s166
      %s170 = sphi 0, %s169
      %s186 = sphi 0, %s170
      %s192 = sphi 0, %s194
      %s195 = sphi 0, %s192
      %s196 = sphi 0, %s195
      %s212 = sphi 0, %s196
    $region4: #{tpu_custom_call.1} parent=1 // loop_header_branch
      %22 = sbr.rel (%p20) target = $region8
    $region5: #{tpu_custom_call.1} parent=1 // loop_body
      %s24 = ssub.s32 %s19, 1
      %s25 = ssub.s32 %s19, 2
      %s32 = sadd.s32 1, %s27
      %p33 = scmp.ge.s32.totalorder %s32, 10
      %s34 = scalar_select %p33, 0, %s32
      %s35 = sadd.s32 1, %s26
      %s36 = scalar_select %p33, %s35, %s26
      %p37 = scmp.ge.s32.totalorder %s36, 2
      %s38 = scalar_select %p37, 0, %s36
      %s39 = ssub.s32 %s26, %s38
      %p40 = scmp.eq.s32.totalorder %s39, 0
      %s42 = sadd.s32 %s41, 1
      %s43 = scalar_select %p40, %s41, %s42
      %p46 = pneg %p40
      %p47 = scmp.eq.s32.totalorder %s19, 19
      %p48 = por %p46, %p47
      %p49 = scmp.ne.s32.totalorder %s41, %s44
      %p50 = scmp.eq.s32.totalorder %s19, 0
      %p51 = por %p49, %p50
      %p52 = scmp.ne.s32.totalorder %s41, %s44
      %p53 = scmp.eq.s32.totalorder %s24, 19
      %p54 = por %p52, %p53
      %p55 = scmp.ne.s32.totalorder %s44, %s45
      %p56 = scmp.eq.s32.totalorder %s24, 0
      %p57 = por %p55, %p56
      %p58 = scmp.ne.s32.totalorder %s44, %s45
      %p59 = scmp.eq.s32.totalorder %s25, 19
      %p60 = por %p58, %p59
      %p62 = scmp.ne.s32.totalorder %s45, %s61
      %p63 = scmp.eq.s32.totalorder %s25, 0
      %p64 = por %p62, %p63
      %s66 = sadd.s32 %s65, 1
      %p69 = scmp.eq.s32.totalorder %s19, 19
      %p70 = scmp.ne.s32.totalorder %s65, %s67
      %p71 = scmp.eq.s32.totalorder %s19, 0
      %p72 = por %p70, %p71
      %p73 = scmp.ne.s32.totalorder %s65, %s67
      %p74 = scmp.eq.s32.totalorder %s24, 19
      %p75 = por %p73, %p74
      %p76 = scmp.ne.s32.totalorder %s67, %s68
      %p77 = scmp.eq.s32.totalorder %s24, 0
      %p78 = por %p76, %p77
      %p79 = scmp.ne.s32.totalorder %s67, %s68
      %p80 = scmp.eq.s32.totalorder %s25, 19
      %p81 = por %p79, %p80
      %p83 = scmp.ne.s32.totalorder %s68, %s82
      %p84 = scmp.eq.s32.totalorder %s25, 0
      %p85 = por %p83, %p84
      %s86 = ssub.s32 %s27, %s34
      %p87 = scmp.eq.s32.totalorder %s86, 0
      %s89 = sadd.s32 %s88, 1
      %s90 = scalar_select %p87, %s88, %s89
      %p93 = pneg %p87
      %p94 = scmp.eq.s32.totalorder %s19, 19
      %p95 = por %p93, %p94
      %p96 = scmp.ne.s32.totalorder %s88, %s91
      %p97 = scmp.eq.s32.totalorder %s19, 0
      %p98 = por %p96, %p97
      %p99 = scmp.ne.s32.totalorder %s88, %s91
      %p100 = scmp.eq.s32.totalorder %s24, 19
      %p101 = por %p99, %p100
      %p102 = scmp.ne.s32.totalorder %s91, %s92
      %p103 = scmp.eq.s32.totalorder %s24, 0
      %p104 = por %p102, %p103
      %p105 = scmp.ne.s32.totalorder %s91, %s92
      %p106 = scmp.eq.s32.totalorder %s25, 19
      %p107 = por %p105, %p106
      %p109 = scmp.ne.s32.totalorder %s92, %s108
      %p110 = scmp.eq.s32.totalorder %s25, 0
      %p111 = por %p109, %p110
      %s112 = ssub.s32 %s27, %s34
      %p113 = scmp.eq.s32.totalorder %s112, 0
      %s115 = sadd.s32 %s114, 1
      %s116 = scalar_select %p113, %s114, %s115
      %p119 = pneg %p113
      %p120 = scmp.eq.s32.totalorder %s19, 19
      %p121 = por %p119, %p120
      %p122 = scmp.ne.s32.totalorder %s114, %s117
      %p123 = scmp.eq.s32.totalorder %s19, 0
      %p124 = por %p122, %p123
      %p125 = scmp.ne.s32.totalorder %s114, %s117
      %p126 = scmp.eq.s32.totalorder %s24, 19
      %p127 = por %p125, %p126
      %p128 = scmp.ne.s32.totalorder %s117, %s118
      %p129 = scmp.eq.s32.totalorder %s24, 0
      %p130 = por %p128, %p129
      %p131 = scmp.ne.s32.totalorder %s117, %s118
      %p132 = scmp.eq.s32.totalorder %s25, 19
      %p133 = por %p131, %p132
      %p135 = scmp.ne.s32.totalorder %s118, %s134
      %p136 = scmp.eq.s32.totalorder %s25, 0
      %p137 = por %p135, %p136
      %s138 = ssub.s32 %s27, %s34
      %p139 = scmp.eq.s32.totalorder %s138, 0
      %s141 = sadd.s32 %s140, 1
      %s142 = scalar_select %p139, %s140, %s141
      %p145 = pneg %p139
      %p146 = scmp.eq.s32.totalorder %s19, 19
      %p147 = por %p145, %p146
      %p148 = scmp.ne.s32.totalorder %s140, %s143
      %p149 = scmp.eq.s32.totalorder %s19, 0
      %p150 = por %p148, %p149
      %p151 = scmp.ne.s32.totalorder %s140, %s143
      %p152 = scmp.eq.s32.totalorder %s24, 19
      %p153 = por %p151, %p152
      %p154 = scmp.ne.s32.totalorder %s143, %s144
      %p155 = scmp.eq.s32.totalorder %s24, 0
      %p156 = por %p154, %p155
      %p157 = scmp.ne.s32.totalorder %s143, %s144
      %p158 = scmp.eq.s32.totalorder %s25, 19
      %p159 = por %p157, %p158
      %p161 = scmp.ne.s32.totalorder %s144, %s160
      %p162 = scmp.eq.s32.totalorder %s25, 0
      %p163 = por %p161, %p162
      %s164 = ssub.s32 %s27, %s34
      %p165 = scmp.eq.s32.totalorder %s164, 0
      %s167 = sadd.s32 %s166, 1
      %s168 = scalar_select %p165, %s166, %s167
      %p171 = pneg %p165
      %p172 = scmp.eq.s32.totalorder %s19, 19
      %p173 = por %p171, %p172
      %p174 = scmp.ne.s32.totalorder %s166, %s169
      %p175 = scmp.eq.s32.totalorder %s19, 0
      %p176 = por %p174, %p175
      %p177 = scmp.ne.s32.totalorder %s166, %s169
      %p178 = scmp.eq.s32.totalorder %s24, 19
      %p179 = por %p177, %p178
      %p180 = scmp.ne.s32.totalorder %s169, %s170
      %p181 = scmp.eq.s32.totalorder %s24, 0
      %p182 = por %p180, %p181
      %p183 = scmp.ne.s32.totalorder %s169, %s170
      %p184 = scmp.eq.s32.totalorder %s25, 19
      %p185 = por %p183, %p184
      %p187 = scmp.ne.s32.totalorder %s170, %s186
      %p188 = scmp.eq.s32.totalorder %s25, 0
      %p189 = por %p187, %p188
      %s190 = ssub.s32 %s26, %s38
      %p191 = scmp.eq.s32.totalorder %s190, 0
      %s193 = sadd.s32 %s192, 1
      %s194 = scalar_select %p191, %s192, %s193
      %p197 = pneg %p191
      %p198 = scmp.eq.s32.totalorder %s19, 19
      %p199 = por %p197, %p198
      %p200 = scmp.ne.s32.totalorder %s192, %s195
      %p201 = scmp.eq.s32.totalorder %s19, 0
      %p202 = por %p200, %p201
      %p203 = scmp.ne.s32.totalorder %s192, %s195
      %p204 = scmp.eq.s32.totalorder %s24, 19
      %p205 = por %p203, %p204
      %p206 = scmp.ne.s32.totalorder %s195, %s196
      %p207 = scmp.eq.s32.totalorder %s24, 0
      %p208 = por %p206, %p207
      %p209 = scmp.ne.s32.totalorder %s195, %s196
      %p210 = scmp.eq.s32.totalorder %s25, 19
      %p211 = por %p209, %p210
      %p213 = scmp.ne.s32.totalorder %s196, %s212
      %p214 = scmp.eq.s32.totalorder %s25, 0
      %p215 = por %p213, %p214
      %p216 = scmp.le.s32.totalorder 1, %s19
      %p217 = scmp.lt.s32.totalorder %s19, 21
      %p218 = pnand %p216, %p217
      %p219 = pneg %p218
      // Predicated region
      $region9: #{tpu_custom_call.1} parent=5 // pred_check
        _
      $region10: #{tpu_custom_call.1} parent=5 // pred_check_branch
        %221 = sbr.rel (%p218) target = $region12
      $region11: #{tpu_custom_call.1} parent=5 // pred_region
        %s222 = ssub.s32 %s19, 1
        // Predicated region
        $region13: #{tpu_custom_call.1} parent=11 // pred_check
          %p223 = pneg %p78
        $region14: #{tpu_custom_call.1} parent=11 // pred_check_branch
          %225 = sbr.rel (%p223) target = $region16
        $region15: #{tpu_custom_call.1} parent=11 // pred_region
          %s227 = ssub.s32 128, 128
          %228 = vsyncadd [#allocation8], %s227
          %s229 = sshll.u32 [#allocation7], 4
          %s230 = int_to_ptr.vmem [resolvable:$true] %s229
          %235 = dma.hbm_to_vmem [thread:$0]  %s1, 128, %s230, [#allocation8], 64, 64, 4
        $region16: #{tpu_custom_call.1} parent=11 // pred_fallthru
          _
      $region12: #{tpu_custom_call.1} parent=5 // pred_fallthru
        _
      %p236 = scmp.lt.s32.totalorder %s19, 20
      // Predicated region
      $region17: #{tpu_custom_call.1} parent=5 // pred_check
        %p237 = pneg %p236
      $region18: #{tpu_custom_call.1} parent=5 // pred_check_branch
        %239 = sbr.rel (%p237) target = $region20
      $region19: #{tpu_custom_call.1} parent=5 // pred_region
        // Predicated region
        $region21: #{tpu_custom_call.1} parent=19 // pred_check
          %p240 = pneg %p51
        $region22: #{tpu_custom_call.1} parent=19 // pred_check_branch
          %242 = sbr.rel (%p240) target = $region24
        $region23: #{tpu_custom_call.1} parent=19 // pred_region
          %s243 = sand.u32 %s19, 1
          %s244 = scalar_lea.sflag [#allocation5], %s243
          %s245 = sand.u32 %s41, 1
          %s246 = smul.addr %s245, 16
          %s247 = scalar_lea.vmem [#allocation4], %s246
          %s248 = smul.u32 2, %s26
          %s250 = ssub.s32 256, 256
          %251 = vsyncadd %s244, %s250
          %s252 = smul.addr %s248, 128
          %s253 = scalar_lea.hbm %s0, %s252
          %s254 = sshll.u32 %s247, 4
          %s255 = int_to_ptr.vmem [resolvable:$true] %s254
          %260 = dma.hbm_to_vmem [thread:$0]  %s253, 256, %s255, %s244, 128, 128, 8
        $region24: #{tpu_custom_call.1} parent=19 // pred_fallthru
          _
        // Predicated region
        $region25: #{tpu_custom_call.1} parent=19 // pred_check
          %p261 = pneg %p98
        $region26: #{tpu_custom_call.1} parent=19 // pred_check_branch
          %263 = sbr.rel (%p261) target = $region28
        $region27: #{tpu_custom_call.1} parent=19 // pred_region
          %s264 = sand.u32 %s19, 1
          %s265 = scalar_lea.sflag [#allocation5], %s264
          %s266 = sand.u32 %s88, 1
          %s267 = smul.addr %s266, 64
          %s268 = scalar_lea.vmem [#allocation9], %s267
          %s270 = ssub.s32 1024, 1024
          %271 = vsyncadd %s265, %s270
          %s272 = smul.addr %s27, 16
          %s273 = smul.addr %s272, 64
          %s274 = scalar_lea.hbm %s2, %s273
          %s275 = sshll.u32 %s268, 4
          %s276 = int_to_ptr.vmem [resolvable:$true] %s275
          %281 = dma.hbm_to_vmem [thread:$0]  %s274, 1024, %s276, %s265, 64, 64, 4
        $region28: #{tpu_custom_call.1} parent=19 // pred_fallthru
          _
        // Predicated region
        $region29: #{tpu_custom_call.1} parent=19 // pred_check
          %p282 = pneg %p124
        $region30: #{tpu_custom_call.1} parent=19 // pred_check_branch
          %284 = sbr.rel (%p282) target = $region32
        $region31: #{tpu_custom_call.1} parent=19 // pred_region
          %s285 = sand.u32 %s19, 1
          %s286 = scalar_lea.sflag [#allocation5], %s285
          %s287 = sand.u32 %s114, 1
          %s288 = scalar_lea.vmem [#allocation10], %s287
          %s290 = ssub.s32 16, 16
          %291 = vsyncadd %s286, %s290
          %s292 = smul.addr %s27, 16
          %s293 = scalar_lea.hbm %s3, %s292
          %s295 = sshll.u32 %s288, 4
          %s296 = int_to_ptr.vmem [resolvable:$true] %s295
          %298 = dma.hbm_to_vmem [thread:$0]  %s293, 16, %s296, %s286
        $region32: #{tpu_custom_call.1} parent=19 // pred_fallthru
          _
        // Predicated region
        $region33: #{tpu_custom_call.1} parent=19 // pred_check
          %p299 = pneg %p150
        $region34: #{tpu_custom_call.1} parent=19 // pred_check_branch
          %301 = sbr.rel (%p299) target = $region36
        $region35: #{tpu_custom_call.1} parent=19 // pred_region
          %s302 = sand.u32 %s19, 1
          %s303 = scalar_lea.sflag [#allocation5], %s302
          %s304 = sand.u32 %s140, 1
          %s305 = smul.addr %s304, 576
          %s306 = scalar_lea.vmem [#allocation11], %s305
          %s308 = ssub.s32 9216, 9216
          %309 = vsyncadd %s303, %s308
          %s310 = smul.addr %s27, 144
          %s311 = smul.addr %s310, 64
          %s312 = scalar_lea.hbm %s4, %s311
          %s313 = sshll.u32 %s306, 4
          %s314 = int_to_ptr.vmem [resolvable:$true] %s313
          %319 = dma.hbm_to_vmem [thread:$0]  %s312, 9216, %s314, %s303, 64, 64, 4
        $region36: #{tpu_custom_call.1} parent=19 // pred_fallthru
          _
        // Predicated region
        $region37: #{tpu_custom_call.1} parent=19 // pred_check
          %p320 = pneg %p176
        $region38: #{tpu_custom_call.1} parent=19 // pred_check_branch
          %322 = sbr.rel (%p320) target = $region40
        $region39: #{tpu_custom_call.1} parent=19 // pred_region
          %s323 = sand.u32 %s19, 1
          %s324 = scalar_lea.sflag [#allocation5], %s323
          %s325 = sand.u32 %s166, 1
          %s326 = scalar_lea.vmem [#allocation12], %s325
          %s328 = ssub.s32 16, 16
          %329 = vsyncadd %s324, %s328
          %s330 = smul.addr %s27, 16
          %s331 = scalar_lea.hbm %s5, %s330
          %s333 = sshll.u32 %s326, 4
          %s334 = int_to_ptr.vmem [resolvable:$true] %s333
          %336 = dma.hbm_to_vmem [thread:$0]  %s331, 16, %s334, %s324
        $region40: #{tpu_custom_call.1} parent=19 // pred_fallthru
          _
      $region20: #{tpu_custom_call.1} parent=5 // pred_fallthru
        _
      %p337 = scmp.le.s32.totalorder 1, %s19
      %p338 = scmp.lt.s32.totalorder %s19, 21
      %p339 = pnand %p337, %p338
      %p340 = pneg %p339
      // Predicated region
      $region41: #{tpu_custom_call.1} parent=5 // pred_check
        _
      $region42: #{tpu_custom_call.1} parent=5 // pred_check_branch
        %342 = sbr.rel (%p339) target = $region44
      $region43: #{tpu_custom_call.1} parent=5 // pred_region
        %s343 = ssub.s32 %s19, 1
        %s344 = sand.u32 %s24, 1
        %s345 = scalar_lea.sflag [#allocation5], %s344
        %s346 = sand.u32 %s44, 1
        %s347 = smul.addr %s346, 16
        %s348 = scalar_lea.vmem [#allocation4], %s347
        // Predicated region
        $region45: #{tpu_custom_call.1} parent=43 // pred_check
          %p349 = pneg %p57
        $region46: #{tpu_custom_call.1} parent=43 // pred_check_branch
          %351 = sbr.rel (%p349) target = $region48
        $region47: #{tpu_custom_call.1} parent=43 // pred_region
          %352 = dma.done %s345, 256
        $region48: #{tpu_custom_call.1} parent=43 // pred_fallthru
          _
        // Predicated region
        $region49: #{tpu_custom_call.1} parent=43 // pred_check
          %p353 = pneg %p78
        $region50: #{tpu_custom_call.1} parent=43 // pred_check_branch
          %355 = sbr.rel (%p353) target = $region52
        $region51: #{tpu_custom_call.1} parent=43 // pred_region
          %356 = dma.done [#allocation8], 128
        $region52: #{tpu_custom_call.1} parent=43 // pred_fallthru
          _
        %s357 = sand.u32 %s24, 1
        %s358 = scalar_lea.sflag [#allocation5], %s357
        %s359 = sand.u32 %s91, 1
        %s360 = smul.addr %s359, 64
        %s361 = scalar_lea.vmem [#allocation9], %s360
        // Predicated region
        $region53: #{tpu_custom_call.1} parent=43 // pred_check
          %p362 = pneg %p104
        $region54: #{tpu_custom_call.1} parent=43 // pred_check_branch
          %364 = sbr.rel (%p362) target = $region56
        $region55: #{tpu_custom_call.1} parent=43 // pred_region
          %365 = dma.done %s358, 1024
        $region56: #{tpu_custom_call.1} parent=43 // pred_fallthru
          _
        %s366 = sand.u32 %s24, 1
        %s367 = scalar_lea.sflag [#allocation5], %s366
        %s368 = sand.u32 %s117, 1
        %s369 = scalar_lea.vmem [#allocation10], %s368
        // Predicated region
        $region57: #{tpu_custom_call.1} parent=43 // pred_check
          %p370 = pneg %p130
        $region58: #{tpu_custom_call.1} parent=43 // pred_check_branch
          %372 = sbr.rel (%p370) target = $region60
        $region59: #{tpu_custom_call.1} parent=43 // pred_region
          %373 = dma.done %s367, 16
        $region60: #{tpu_custom_call.1} parent=43 // pred_fallthru
          _
        %s374 = sand.u32 %s24, 1
        %s375 = scalar_lea.sflag [#allocation5], %s374
        %s376 = sand.u32 %s143, 1
        %s377 = smul.addr %s376, 576
        %s378 = scalar_lea.vmem [#allocation11], %s377
        // Predicated region
        $region61: #{tpu_custom_call.1} parent=43 // pred_check
          %p379 = pneg %p156
        $region62: #{tpu_custom_call.1} parent=43 // pred_check_branch
          %381 = sbr.rel (%p379) target = $region64
        $region63: #{tpu_custom_call.1} parent=43 // pred_region
          %382 = dma.done %s375, 9216
        $region64: #{tpu_custom_call.1} parent=43 // pred_fallthru
          _
        %s383 = sand.u32 %s24, 1
        %s384 = scalar_lea.sflag [#allocation5], %s383
        %s385 = sand.u32 %s169, 1
        %s386 = scalar_lea.vmem [#allocation12], %s385
        // Predicated region
        $region65: #{tpu_custom_call.1} parent=43 // pred_check
          %p387 = pneg %p182
        $region66: #{tpu_custom_call.1} parent=43 // pred_check_branch
          %389 = sbr.rel (%p387) target = $region68
        $region67: #{tpu_custom_call.1} parent=43 // pred_region
          %390 = dma.done %s384, 16
        $region68: #{tpu_custom_call.1} parent=43 // pred_fallthru
          _
        %s391 = sand.u32 %s24, 1
        %s392 = scalar_lea.sflag [#allocation5], %s391
        %s393 = sand.u32 %s44, 1
        %s394 = smul.addr %s393, 16
        %s395 = scalar_lea.vmem [#allocation4], %s394
        %p396 = pneg %p57
        %p397 = pneg %p54
        %p398 = pneg %p78
        %p399 = pneg %p75
        %s400 = sand.u32 %s24, 1
        %s401 = scalar_lea.sflag [#allocation5], %s400
        %s402 = sand.u32 %s91, 1
        %s403 = smul.addr %s402, 64
        %s404 = scalar_lea.vmem [#allocation9], %s403
        %p405 = pneg %p104
        %p406 = pneg %p101
        %s407 = sand.u32 %s24, 1
        %s408 = scalar_lea.sflag [#allocation5], %s407
        %s409 = sand.u32 %s117, 1
        %s410 = scalar_lea.vmem [#allocation10], %s409
        %p411 = pneg %p130
        %p412 = pneg %p127
        %s413 = sand.u32 %s24, 1
        %s414 = scalar_lea.sflag [#allocation5], %s413
        %s415 = sand.u32 %s143, 1
        %s416 = smul.addr %s415, 576
        %s417 = scalar_lea.vmem [#allocation11], %s416
        %p418 = pneg %p156
        %p419 = pneg %p153
        %s420 = sand.u32 %s24, 1
        %s421 = scalar_lea.sflag [#allocation5], %s420
        %s422 = sand.u32 %s169, 1
        %s423 = scalar_lea.vmem [#allocation12], %s422
        %p424 = pneg %p182
        %p425 = pneg %p179
        %p426 = pneg %p208
        %p427 = pneg %p205
        %s428 = sand.u32 %s195, 1
        %s429 = scalar_lea.sflag [#allocation6], %s428
        %s430 = sand.u32 %s195, 1
        %s431 = smul.addr %s430, 16
        %s432 = scalar_lea.vmem [#allocation13], %s431
        %s433 = smul.u32 2, %s28
        %s434 = smul.u32 2, %s28
        %p436 = scmp.eq.s32.totalorder %s29, 0
        // Predicated region
        $region69: #{tpu_custom_call.1} parent=43 // pred_check
          %p437 = pneg %p436
        $region70: #{tpu_custom_call.1} parent=43 // pred_check_branch
          %439 = sbr.rel (%p437) target = $region72
        $region71: #{tpu_custom_call.1} parent=43 // pred_region
          %v440 = vld [vmem:[%s348] sm:$0xff]
          %v441 = vld [vmem:[%s348 + $0x8] sm:$0xff]
          %442 = vst [vmem:[#allocation2] sm:$0xff] %v440
          %443 = vst [vmem:[#allocation2 + $0x8] sm:$0xff] %v441
        $region72: #{tpu_custom_call.1} parent=43 // pred_fallthru
          _
        %v444 = vld [vmem:[#allocation2] sm:$0xff]
        %v445 = vld [vmem:[#allocation2 + $0x8] sm:$0xff]
        %v446 = vpack.c.bf16 %v445, %v444
        %v447 = vld [vmem:[%s361] sm:$0xf]
        %v448 = vld [vmem:[%s361 + $0x4] sm:$0xf]
        %v449 = vld [vmem:[%s361 + $0x8] sm:$0xf]
        %v450 = vld [vmem:[%s361 + $0xc] sm:$0xf]
        %v451 = vld [vmem:[%s361 + $0x10] sm:$0xf]
        %v452 = vld [vmem:[%s361 + $0x14] sm:$0xf]
        %v453 = vld [vmem:[%s361 + $0x18] sm:$0xf]
        %v454 = vld [vmem:[%s361 + $0x1c] sm:$0xf]
        %v455 = vld [vmem:[%s361 + $0x20] sm:$0xf]
        %v456 = vld [vmem:[%s361 + $0x24] sm:$0xf]
        %v457 = vld [vmem:[%s361 + $0x28] sm:$0xf]
        %v458 = vld [vmem:[%s361 + $0x2c] sm:$0xf]
        %v459 = vld [vmem:[%s361 + $0x30] sm:$0xf]
        %v460 = vld [vmem:[%s361 + $0x34] sm:$0xf]
        %v461 = vld [vmem:[%s361 + $0x38] sm:$0xf]
        %v462 = vld [vmem:[%s361 + $0x3c] sm:$0xf]
        %v479 = vunpack.c.l.b16 %v447
        %v480 = vunpack.c.l.b16 %v448
        %v481 = vunpack.c.l.b16 %v449
        %v482 = vunpack.c.l.b16 %v450
        %v483 = vunpack.c.l.b16 %v451
        %v484 = vunpack.c.l.b16 %v452
        %v485 = vunpack.c.l.b16 %v453
        %v486 = vunpack.c.l.b16 %v454
        %v487 = vunpack.c.l.b16 %v455
        %v488 = vunpack.c.l.b16 %v456
        %v489 = vunpack.c.l.b16 %v457
        %v490 = vunpack.c.l.b16 %v458
        %v491 = vunpack.c.l.b16 %v459
        %v492 = vunpack.c.l.b16 %v460
        %v493 = vunpack.c.l.b16 %v461
        %v494 = vunpack.c.l.b16 %v462
        %v495 = vpack.c.b16 %v480, %v479
        %v496 = vpack.c.b16 %v482, %v481
        %v497 = vpack.c.b16 %v484, %v483
        %v498 = vpack.c.b16 %v486, %v485
        %v499 = vpack.c.b16 %v488, %v487
        %v500 = vpack.c.b16 %v490, %v489
        %v501 = vpack.c.b16 %v492, %v491
        %v502 = vpack.c.b16 %v494, %v493
        %511 = vmatprep.subr.bf16.mxu0 0
        %512 = vmatpush1.bf16.msra.mxu0 %v495
        %513 = vmatprep.subr.bf16.mxu0 0
        %514 = vmatpush1.bf16.msra.mxu0 %v496
        %515 = vmatprep.subr.bf16.mxu0 0
        %516 = vmatpush1.bf16.msra.mxu0 %v497
        %517 = vmatprep.subr.bf16.mxu0 0
        %518 = vmatpush1.bf16.msra.mxu0 %v498
        %519 = vmatprep.subr.bf16.mxu0 0
        %520 = vmatpush1.bf16.msra.mxu0 %v499
        %521 = vmatprep.subr.bf16.mxu0 0
        %522 = vmatpush1.bf16.msra.mxu0 %v500
        %523 = vmatprep.subr.bf16.mxu0 0
        %524 = vmatpush1.bf16.msra.mxu0 %v501
        %525 = vmatprep.subr.bf16.mxu0 0
        %526 = vmatpush1.bf16.msra.mxu0 %v502
        %527 = vmatprep.subr.bf16.mxu0 0
        %528 = vmatpush1.bf16.msra.mxu0 0
        %529 = vmatprep.subr.bf16.mxu0 0
        %530 = vmatpush1.bf16.msra.mxu0 0
        %531 = vmatprep.subr.bf16.mxu0 0
        %532 = vmatpush1.bf16.msra.mxu0 0
        %533 = vmatprep.subr.bf16.mxu0 0
        %534 = vmatpush1.bf16.msra.mxu0 0
        %535 = vmatprep.subr.bf16.mxu0 0
        %536 = vmatpush1.bf16.msra.mxu0 0
        %537 = vmatprep.subr.bf16.mxu0 0
        %538 = vmatpush1.bf16.msra.mxu0 0
        %539 = vmatprep.subr.bf16.mxu0 0
        %540 = vmatpush1.bf16.msra.mxu0 0
        %541 = vmatprep.subr.bf16.mxu0 0
        %542 = vmatpush1.bf16.msra.mxu0 0
        %543 = vmatprep.mubr.bf16.mxu0 0
        %544 = vmatmul.mubr.bf16.gmra.mrb[0].mxu0 %v446
        %v545 = vpop.f32.mrb[0].mxu0
        %v546 = vadd.f32 0.0, %v545
        %v547 = vpop.f32.mrb[0].mxu0
        %v548 = vpop.f32.mrb[0].mxu0
        %v549 = vadd.f32 0.0, %v548
        %v550 = vpop.f32.mrb[0].mxu0
        %551 = vdwg.mxu0
        %v552 = vld [vmem:[#allocation7] sm:$0xf]
        %v553 = vld [vmem:[#allocation7 + $0x4] sm:$0xf]
        %v554 = vpack.c.bf16 %v549, %v546
        %v555 = vld [vmem:[%s369] sm:$0x1]
        %v557 = vlaneseq
        %v558 = vshrl.u32 %v557, 7
        %v559 = vsub.s32 0, %v558
        %v560 = vrot.slane %v555, %v559
        %v564 = vunpack.c.l.b16 %v552
        %v565 = vunpack.c.l.b16 %v553
        %v566 = vpack.c.b16 %v565, %v564
        %vm567 = vcmask 130048
        %v569 = vsel %vm567, %v566, 0
        %571 = vmatprep.subr.bf16.mxu0 0
        %572 = vmatpush1.bf16.msra.mxu0 %v554
        %573 = vmatprep.subr.bf16.mxu0 0
        %574 = vmatpush1.bf16.msra.mxu0 0
        %575 = vmatprep.subr.bf16.mxu0 0
        %576 = vmatpush1.bf16.msra.mxu0 0
        %577 = vmatprep.subr.bf16.mxu0 0
        %578 = vmatpush1.bf16.msra.mxu0 0
        %579 = vmatprep.subr.bf16.mxu0 0
        %580 = vmatpush1.bf16.msra.mxu0 0
        %581 = vmatprep.subr.bf16.mxu0 0
        %582 = vmatpush1.bf16.msra.mxu0 0
        %583 = vmatprep.subr.bf16.mxu0 0
        %584 = vmatpush1.bf16.msra.mxu0 0
        %585 = vmatprep.subr.bf16.mxu0 0
        %586 = vmatpush1.bf16.msra.mxu0 0
        %587 = vmatprep.subr.bf16.mxu0 0
        %588 = vmatpush1.bf16.msra.mxu0 0
        %589 = vmatprep.subr.bf16.mxu0 0
        %590 = vmatpush1.bf16.msra.mxu0 0
        %591 = vmatprep.subr.bf16.mxu0 0
        %592 = vmatpush1.bf16.msra.mxu0 0
        %593 = vmatprep.subr.bf16.mxu0 0
        %594 = vmatpush1.bf16.msra.mxu0 0
        %595 = vmatprep.subr.bf16.mxu0 0
        %596 = vmatpush1.bf16.msra.mxu0 0
        %597 = vmatprep.subr.bf16.mxu0 0
        %598 = vmatpush1.bf16.msra.mxu0 0
        %599 = vmatprep.subr.bf16.mxu0 0
        %600 = vmatpush1.bf16.msra.mxu0 0
        %601 = vmatprep.subr.bf16.mxu0 0
        %602 = vmatpush1.bf16.msra.mxu0 0
        %603 = vmatprep.mubr.bf16.mxu0 0
        %604 = vmatmul.mubr.bf16.gmra.mrb[0].mxu0 %v569
        %v605 = vpop.f32.mrb[0].mxu0
        %v606 = vadd.f32 %v560, %v605
        %v607 = vpop.f32.mrb[0].mxu0
        %v608 = vpop.f32.mrb[0].mxu0
        %v609 = vadd.f32 %v560, %v608
        %v610 = vpop.f32.mrb[0].mxu0
        %611 = vdwg.mxu0
        %v612 = vmul.f32 %v606, 0.999995
        %v613 = vmul.f32 %v609, 0.999995
        %v614 = vmin.f32 %v612, 20.0
        %v615 = vmin.f32 %v613, 20.0
        %v616 = vmul.f32 %v614, 1.442695
        %v617 = vpow.pop %v616
        %v618 = vmul.f32 %v615, 1.442695
        %v619 = vpow.pop %v618
        %v620 = vadd.f32 %v617, 2.0
        %v621 = vadd.f32 %v619, 2.0
        %v622 = vmul.f32 %v617, %v620
        %v623 = vmul.f32 %v619, %v621
        %v624 = vadd.f32 %v622, 2.0
        %v625 = vadd.f32 %v623, 2.0
        %v626 = vrcp.pop %v624
        %v627 = vrcp.pop %v625
        %v628 = vmul.f32 %v622, %v626
        %v629 = vmul.f32 %v623, %v627
        %v630 = vmul.f32 %v612, %v628
        %v631 = vmul.f32 %v613, %v629
        %v632 = vlaneseq
        %v633 = vshrl.u32 %v632, 7
        %v634 = vadd.s32 %v633, 8
        %vm635 = vcmp.lt.s32.totalorder %v633, 0
        %v636 = vsub.s32 0, %v633
        %v637 = vsel %vm635, %v636, %v633
        %v638 = vshrl.u32 %v637, 4
        %v639 = vand.u32 %v637, 15
        %v640 = vsub.s32 0, %v639
        %v641 = vsel %vm635, %v640, %v639
        %vm642 = vcmp.lt.s32.totalorder %v634, 0
        %v643 = vsub.s32 0, %v634
        %v644 = vsel %vm642, %v643, %v634
        %v645 = vshrl.u32 %v644, 4
        %v646 = vand.u32 %v644, 15
        %v647 = vsub.s32 0, %v646
        %v648 = vsel %vm642, %v647, %v646
        %vm649 = vcmp.ne.s32.totalorder %v641, 0
        %vm650 = vcmp.ne.s32.totalorder %v648, 0
        %vm651 = vcmp.lt.s32.totalorder %v641, 0
        %vm652 = vcmp.lt.s32.totalorder %v648, 0
        %vm653 = vmand %vm651, %vm649
        %vm654 = vmand %vm652, %vm650
        %v655 = vadd.s32 %v641, 16
        %v656 = vadd.s32 %v648, 16
        %v657 = vsel %vm653, %v655, %v641
        %v658 = vsel %vm654, %v656, %v648
        %v659 = vrot.slane %v630, 4
        %v660 = vrot.slane %v631, 4
        %vm661 = vcmp.lt.s32.totalorder %v633, 4
        %v662 = vsel %vm661, %v659, %v660
        %v663 = vsel %vm661, %v660, %v659
        %v664 = vadd.s32 %v657, 4294967292
        %v665 = vadd.s32 %v658, 4294967292
        %vm666 = vcmp.ge.s32.totalorder %v664, 0
        %vm667 = vcmp.ge.s32.totalorder %v665, 0
        %vm668 = vcmp.lt.s32.totalorder %v664, 16
        %vm669 = vcmp.lt.s32.totalorder %v665, 16
        %vm670 = vmand %vm666, %vm668
        %vm671 = vmand %vm667, %vm669
        %v672 = vsel %vm670, %v663, 0.0
        %v673 = vsel %vm671, %v662, 0.0
        %v674 = vpack.c.bf16 %v673, %v672
        %v675 = vld [vmem:[%s378] sm:$0xf]
        %v676 = vld [vmem:[%s378 + $0x4] sm:$0xf]
        %v677 = vld [vmem:[%s378 + $0x8] sm:$0xf]
        %v678 = vld [vmem:[%s378 + $0xc] sm:$0xf]
        %v679 = vld [vmem:[%s378 + $0x10] sm:$0xf]
        %v680 = vld [vmem:[%s378 + $0x14] sm:$0xf]
        %v681 = vld [vmem:[%s378 + $0x18] sm:$0xf]
        %v682 = vld [vmem:[%s378 + $0x1c] sm:$0xf]
        %v683 = vld [vmem:[%s378 + $0x20] sm:$0xf]
        %v684 = vld [vmem:[%s378 + $0x24] sm:$0xf]
        %v685 = vld [vmem:[%s378 + $0x28] sm:$0xf]
        %v686 = vld [vmem:[%s378 + $0x2c] sm:$0xf]
        %v687 = vld [vmem:[%s378 + $0x30] sm:$0xf]
        %v688 = vld [vmem:[%s378 + $0x34] sm:$0xf]
        %v689 = vld [vmem:[%s378 + $0x38] sm:$0xf]
        %v690 = vld [vmem:[%s378 + $0x3c] sm:$0xf]
        %v691 = vrot.slane %v630, 5
        %v692 = vrot.slane %v631, 5
        %vm693 = vcmp.lt.s32.totalorder %v633, 3
        %v694 = vsel %vm693, %v691, %v692
        %v695 = vsel %vm693, %v692, %v691
        %v696 = vadd.s32 %v657, 4294967293
        %v697 = vadd.s32 %v658, 4294967293
        %vm698 = vcmp.ge.s32.totalorder %v696, 0
        %vm699 = vcmp.ge.s32.totalorder %v697, 0
        %vm700 = vcmp.lt.s32.totalorder %v696, 16
        %vm701 = vcmp.lt.s32.totalorder %v697, 16
        %vm702 = vmand %vm698, %vm700
        %vm703 = vmand %vm699, %vm701
        %v704 = vsel %vm702, %v695, 0.0
        %v705 = vsel %vm703, %v694, 0.0
        %v706 = vpack.c.bf16 %v705, %v704
        %v707 = vld [vmem:[%s378 + $0x40] sm:$0xf]
        %v708 = vld [vmem:[%s378 + $0x44] sm:$0xf]
        %v709 = vld [vmem:[%s378 + $0x48] sm:$0xf]
        %v710 = vld [vmem:[%s378 + $0x4c] sm:$0xf]
        %v711 = vld [vmem:[%s378 + $0x50] sm:$0xf]
        %v712 = vld [vmem:[%s378 + $0x54] sm:$0xf]
        %v713 = vld [vmem:[%s378 + $0x58] sm:$0xf]
        %v714 = vld [vmem:[%s378 + $0x5c] sm:$0xf]
        %v715 = vld [vmem:[%s378 + $0x60] sm:$0xf]
        %v716 = vld [vmem:[%s378 + $0x64] sm:$0xf]
        %v717 = vld [vmem:[%s378 + $0x68] sm:$0xf]
        %v718 = vld [vmem:[%s378 + $0x6c] sm:$0xf]
        %v719 = vld [vmem:[%s378 + $0x70] sm:$0xf]
        %v720 = vld [vmem:[%s378 + $0x74] sm:$0xf]
        %v721 = vld [vmem:[%s378 + $0x78] sm:$0xf]
        %v722 = vld [vmem:[%s378 + $0x7c] sm:$0xf]
        %v739 = vunpack.c.l.b16 %v707
        %v740 = vunpack.c.l.b16 %v708
        %v741 = vunpack.c.l.b16 %v709
        %v742 = vunpack.c.l.b16 %v710
        %v743 = vunpack.c.l.b16 %v711
        %v744 = vunpack.c.l.b16 %v712
        %v745 = vunpack.c.l.b16 %v713
        %v746 = vunpack.c.l.b16 %v714
        %v747 = vunpack.c.l.b16 %v715
        %v748 = vunpack.c.l.b16 %v716
        %v749 = vunpack.c.l.b16 %v717
        %v750 = vunpack.c.l.b16 %v718
        %v751 = vunpack.c.l.b16 %v719
        %v752 = vunpack.c.l.b16 %v720
        %v753 = vunpack.c.l.b16 %v721
        %v754 = vunpack.c.l.b16 %v722
        %v755 = vpack.c.b16 %v740, %v739
        %v756 = vpack.c.b16 %v742, %v741
        %v757 = vpack.c.b16 %v744, %v743
        %v758 = vpack.c.b16 %v746, %v745
        %v759 = vpack.c.b16 %v748, %v747
        %v760 = vpack.c.b16 %v750, %v749
        %v761 = vpack.c.b16 %v752, %v751
        %v762 = vpack.c.b16 %v754, %v753
        %771 = vmatprep.subr.bf16.mxu0 0
        %772 = vmatpush1.bf16.msra.mxu0 %v755
        %773 = vmatprep.subr.bf16.mxu0 0
        %774 = vmatpush1.bf16.msra.mxu0 %v756
        %775 = vmatprep.subr.bf16.mxu0 0
        %776 = vmatpush1.bf16.msra.mxu0 %v757
        %777 = vmatprep.subr.bf16.mxu0 0
        %778 = vmatpush1.bf16.msra.mxu0 %v758
        %779 = vmatprep.subr.bf16.mxu0 0
        %780 = vmatpush1.bf16.msra.mxu0 %v759
        %781 = vmatprep.subr.bf16.mxu0 0
        %782 = vmatpush1.bf16.msra.mxu0 %v760
        %783 = vmatprep.subr.bf16.mxu0 0
        %784 = vmatpush1.bf16.msra.mxu0 %v761
        %785 = vmatprep.subr.bf16.mxu0 0
        %786 = vmatpush1.bf16.msra.mxu0 %v762
        %787 = vmatprep.subr.bf16.mxu0 0
        %788 = vmatpush1.bf16.msra.mxu0 0
        %789 = vmatprep.subr.bf16.mxu0 0
        %790 = vmatpush1.bf16.msra.mxu0 0
        %791 = vmatprep.subr.bf16.mxu0 0
        %792 = vmatpush1.bf16.msra.mxu0 0
        %793 = vmatprep.subr.bf16.mxu0 0
        %794 = vmatpush1.bf16.msra.mxu0 0
        %795 = vmatprep.subr.bf16.mxu0 0
        %796 = vmatpush1.bf16.msra.mxu0 0
        %797 = vmatprep.subr.bf16.mxu0 0
        %798 = vmatpush1.bf16.msra.mxu0 0
        %799 = vmatprep.subr.bf16.mxu0 0
        %800 = vmatpush1.bf16.msra.mxu0 0
        %801 = vmatprep.subr.bf16.mxu0 0
        %802 = vmatpush1.bf16.msra.mxu0 0
        %803 = vmatprep.mubr.bf16.mxu0 0
        %804 = vmatmul.mubr.bf16.gmra.mrb[0].mxu0 %v706
        %v805 = vpop.f32.mrb[0].mxu0
        %v806 = vadd.f32 0.0, %v805
        %v807 = vpop.f32.mrb[0].mxu0
        %v808 = vpop.f32.mrb[0].mxu0
        %v809 = vadd.f32 0.0, %v808
        %v810 = vpop.f32.mrb[0].mxu0
        %811 = vdwg.mxu0
        %v828 = vunpack.c.l.b16 %v675
        %v829 = vunpack.c.l.b16 %v676
        %v830 = vunpack.c.l.b16 %v677
        %v831 = vunpack.c.l.b16 %v678
        %v832 = vunpack.c.l.b16 %v679
        %v833 = vunpack.c.l.b16 %v680
        %v834 = vunpack.c.l.b16 %v681
        %v835 = vunpack.c.l.b16 %v682
        %v836 = vunpack.c.l.b16 %v683
        %v837 = vunpack.c.l.b16 %v684
        %v838 = vunpack.c.l.b16 %v685
        %v839 = vunpack.c.l.b16 %v686
        %v840 = vunpack.c.l.b16 %v687
        %v841 = vunpack.c.l.b16 %v688
        %v842 = vunpack.c.l.b16 %v689
        %v843 = vunpack.c.l.b16 %v690
        %v844 = vpack.c.b16 %v829, %v828
        %v845 = vpack.c.b16 %v831, %v830
        %v846 = vpack.c.b16 %v833, %v832
        %v847 = vpack.c.b16 %v835, %v834
        %v848 = vpack.c.b16 %v837, %v836
        %v849 = vpack.c.b16 %v839, %v838
        %v850 = vpack.c.b16 %v841, %v840
        %v851 = vpack.c.b16 %v843, %v842
        %860 = vmatprep.subr.bf16.mxu0 0
        %861 = vmatpush1.bf16.msra.mxu0 %v844
        %862 = vmatprep.subr.bf16.mxu0 0
        %863 = vmatpush1.bf16.msra.mxu0 %v845
        %864 = vmatprep.subr.bf16.mxu0 0
        %865 = vmatpush1.bf16.msra.mxu0 %v846
        %866 = vmatprep.subr.bf16.mxu0 0
        %867 = vmatpush1.bf16.msra.mxu0 %v847
        %868 = vmatprep.subr.bf16.mxu0 0
        %869 = vmatpush1.bf16.msra.mxu0 %v848
        %870 = vmatprep.subr.bf16.mxu0 0
        %871 = vmatpush1.bf16.msra.mxu0 %v849
        %872 = vmatprep.subr.bf16.mxu0 0
        %873 = vmatpush1.bf16.msra.mxu0 %v850
        %874 = vmatprep.subr.bf16.mxu0 0
        %875 = vmatpush1.bf16.msra.mxu0 %v851
        %876 = vmatprep.subr.bf16.mxu0 0
        %877 = vmatpush1.bf16.msra.mxu0 0
        %878 = vmatprep.subr.bf16.mxu0 0
        %879 = vmatpush1.bf16.msra.mxu0 0
        %880 = vmatprep.subr.bf16.mxu0 0
        %881 = vmatpush1.bf16.msra.mxu0 0
        %882 = vmatprep.subr.bf16.mxu0 0
        %883 = vmatpush1.bf16.msra.mxu0 0
        %884 = vmatprep.subr.bf16.mxu0 0
        %885 = vmatpush1.bf16.msra.mxu0 0
        %886 = vmatprep.subr.bf16.mxu0 0
        %887 = vmatpush1.bf16.msra.mxu0 0
        %888 = vmatprep.subr.bf16.mxu0 0
        %889 = vmatpush1.bf16.msra.mxu0 0
        %890 = vmatprep.subr.bf16.mxu0 0
        %891 = vmatpush1.bf16.msra.mxu0 0
        %892 = vmatprep.mubr.bf16.mxu0 0
        %893 = vmatmul.mubr.bf16.gmra.mrb[0].mxu0 %v674
        %v894 = vpop.f32.mrb[0].mxu0
        %v895 = vadd.f32 %v806, %v894
        %v896 = vpop.f32.mrb[0].mxu0
        %v897 = vpop.f32.mrb[0].mxu0
        %v898 = vadd.f32 %v809, %v897
        %v899 = vpop.f32.mrb[0].mxu0
        %900 = vdwg.mxu0
        %v901 = vrot.slane %v630, 6
        %v902 = vrot.slane %v631, 6
        %vm903 = vcmp.lt.s32.totalorder %v633, 2
        %v904 = vsel %vm903, %v901, %v902
        %v905 = vsel %vm903, %v902, %v901
        %v906 = vadd.s32 %v657, 4294967294
        %v907 = vadd.s32 %v658, 4294967294
        %vm908 = vcmp.ge.s32.totalorder %v906, 0
        %vm909 = vcmp.ge.s32.totalorder %v907, 0
        %vm910 = vcmp.lt.s32.totalorder %v906, 16
        %vm911 = vcmp.lt.s32.totalorder %v907, 16
        %vm912 = vmand %vm908, %vm910
        %vm913 = vmand %vm909, %vm911
        %v914 = vsel %vm912, %v905, 0.0
        %v915 = vsel %vm913, %v904, 0.0
        %v916 = vpack.c.bf16 %v915, %v914
        %v917 = vld [vmem:[%s378 + $0x80] sm:$0xf]
        %v918 = vld [vmem:[%s378 + $0x84] sm:$0xf]
        %v919 = vld [vmem:[%s378 + $0x88] sm:$0xf]
        %v920 = vld [vmem:[%s378 + $0x8c] sm:$0xf]
        %v921 = vld [vmem:[%s378 + $0x90] sm:$0xf]
        %v922 = vld [vmem:[%s378 + $0x94] sm:$0xf]
        %v923 = vld [vmem:[%s378 + $0x98] sm:$0xf]
        %v924 = vld [vmem:[%s378 + $0x9c] sm:$0xf]
        %v925 = vld [vmem:[%s378 + $0xa0] sm:$0xf]
        %v926 = vld [vmem:[%s378 + $0xa4] sm:$0xf]
        %v927 = vld [vmem:[%s378 + $0xa8] sm:$0xf]
        %v928 = vld [vmem:[%s378 + $0xac] sm:$0xf]
        %v929 = vld [vmem:[%s378 + $0xb0] sm:$0xf]
        %v930 = vld [vmem:[%s378 + $0xb4] sm:$0xf]
        %v931 = vld [vmem:[%s378 + $0xb8] sm:$0xf]
        %v932 = vld [vmem:[%s378 + $0xbc] sm:$0xf]
        %v949 = vunpack.c.l.b16 %v917
        %v950 = vunpack.c.l.b16 %v918
        %v951 = vunpack.c.l.b16 %v919
        %v952 = vunpack.c.l.b16 %v920
        %v953 = vunpack.c.l.b16 %v921
        %v954 = vunpack.c.l.b16 %v922
        %v955 = vunpack.c.l.b16 %v923
        %v956 = vunpack.c.l.b16 %v924
        %v957 = vunpack.c.l.b16 %v925
        %v958 = vunpack.c.l.b16 %v926
        %v959 = vunpack.c.l.b16 %v927
        %v960 = vunpack.c.l.b16 %v928
        %v961 = vunpack.c.l.b16 %v929
        %v962 = vunpack.c.l.b16 %v930
        %v963 = vunpack.c.l.b16 %v931
        %v964 = vunpack.c.l.b16 %v932
        %v965 = vpack.c.b16 %v950, %v949
        %v966 = vpack.c.b16 %v952, %v951
        %v967 = vpack.c.b16 %v954, %v953
        %v968 = vpack.c.b16 %v956, %v955
        %v969 = vpack.c.b16 %v958, %v957
        %v970 = vpack.c.b16 %v960, %v959
        %v971 = vpack.c.b16 %v962, %v961
        %v972 = vpack.c.b16 %v964, %v963
        %981 = vmatprep.subr.bf16.mxu0 0
        %982 = vmatpush1.bf16.msra.mxu0 %v965
        %983 = vmatprep.subr.bf16.mxu0 0
        %984 = vmatpush1.bf16.msra.mxu0 %v966
        %985 = vmatprep.subr.bf16.mxu0 0
        %986 = vmatpush1.bf16.msra.mxu0 %v967
        %987 = vmatprep.subr.bf16.mxu0 0
        %988 = vmatpush1.bf16.msra.mxu0 %v968
        %989 = vmatprep.subr.bf16.mxu0 0
        %990 = vmatpush1.bf16.msra.mxu0 %v969
        %991 = vmatprep.subr.bf16.mxu0 0
        %992 = vmatpush1.bf16.msra.mxu0 %v970
        %993 = vmatprep.subr.bf16.mxu0 0
        %994 = vmatpush1.bf16.msra.mxu0 %v971
        %995 = vmatprep.subr.bf16.mxu0 0
        %996 = vmatpush1.bf16.msra.mxu0 %v972
        %997 = vmatprep.subr.bf16.mxu0 0
        %998 = vmatpush1.bf16.msra.mxu0 0
        %999 = vmatprep.subr.bf16.mxu0 0
        %1000 = vmatpush1.bf16.msra.mxu0 0
        %1001 = vmatprep.subr.bf16.mxu0 0
        %1002 = vmatpush1.bf16.msra.mxu0 0
        %1003 = vmatprep.subr.bf16.mxu0 0
        %1004 = vmatpush1.bf16.msra.mxu0 0
        %1005 = vmatprep.subr.bf16.mxu0 0
        %1006 = vmatpush1.bf16.msra.mxu0 0
        %1007 = vmatprep.subr.bf16.mxu0 0
        %1008 = vmatpush1.bf16.msra.mxu0 0
        %1009 = vmatprep.subr.bf16.mxu0 0
        %1010 = vmatpush1.bf16.msra.mxu0 0
        %1011 = vmatprep.subr.bf16.mxu0 0
        %1012 = vmatpush1.bf16.msra.mxu0 0
        %1013 = vmatprep.mubr.bf16.mxu0 0
        %1014 = vmatmul.mubr.bf16.gmra.mrb[0].mxu0 %v916
        %v1015 = vpop.f32.mrb[0].mxu0
        %v1016 = vadd.f32 0.0, %v1015
        %v1017 = vpop.f32.mrb[0].mxu0
        %v1018 = vpop.f32.mrb[0].mxu0
        %v1019 = vadd.f32 0.0, %v1018
        %v1020 = vpop.f32.mrb[0].mxu0
        %1021 = vdwg.mxu0
        %v1022 = vadd.f32 %v895, %v1016
        %v1023 = vadd.f32 %v898, %v1019
        %v1024 = vrot.slane %v630, 7
        %v1025 = vrot.slane %v631, 7
        %vm1026 = vcmp.lt.s32.totalorder %v633, 1
        %v1027 = vsel %vm1026, %v1024, %v1025
        %v1028 = vsel %vm1026, %v1025, %v1024
        %v1029 = vadd.s32 %v657, 4294967295
        %v1030 = vadd.s32 %v658, 4294967295
        %vm1031 = vcmp.ge.s32.totalorder %v1029, 0
        %vm1032 = vcmp.ge.s32.totalorder %v1030, 0
        %vm1033 = vcmp.lt.s32.totalorder %v1029, 16
        %vm1034 = vcmp.lt.s32.totalorder %v1030, 16
        %vm1035 = vmand %vm1031, %vm1033
        %vm1036 = vmand %vm1032, %vm1034
        %v1037 = vsel %vm1035, %v1028, 0.0
        %v1038 = vsel %vm1036, %v1027, 0.0
        %v1039 = vpack.c.bf16 %v1038, %v1037
        %v1040 = vld [vmem:[%s378 + $0xc0] sm:$0xf]
        %v1041 = vld [vmem:[%s378 + $0xc4] sm:$0xf]
        %v1042 = vld [vmem:[%s378 + $0xc8] sm:$0xf]
        %v1043 = vld [vmem:[%s378 + $0xcc] sm:$0xf]
        %v1044 = vld [vmem:[%s378 + $0xd0] sm:$0xf]
        %v1045 = vld [vmem:[%s378 + $0xd4] sm:$0xf]
        %v1046 = vld [vmem:[%s378 + $0xd8] sm:$0xf]
        %v1047 = vld [vmem:[%s378 + $0xdc] sm:$0xf]
        %v1048 = vld [vmem:[%s378 + $0xe0] sm:$0xf]
        %v1049 = vld [vmem:[%s378 + $0xe4] sm:$0xf]
        %v1050 = vld [vmem:[%s378 + $0xe8] sm:$0xf]
        %v1051 = vld [vmem:[%s378 + $0xec] sm:$0xf]
        %v1052 = vld [vmem:[%s378 + $0xf0] sm:$0xf]
        %v1053 = vld [vmem:[%s378 + $0xf4] sm:$0xf]
        %v1054 = vld [vmem:[%s378 + $0xf8] sm:$0xf]
        %v1055 = vld [vmem:[%s378 + $0xfc] sm:$0xf]
        %v1072 = vunpack.c.l.b16 %v1040
        %v1073 = vunpack.c.l.b16 %v1041
        %v1074 = vunpack.c.l.b16 %v1042
        %v1075 = vunpack.c.l.b16 %v1043
        %v1076 = vunpack.c.l.b16 %v1044
        %v1077 = vunpack.c.l.b16 %v1045
        %v1078 = vunpack.c.l.b16 %v1046
        %v1079 = vunpack.c.l.b16 %v1047
        %v1080 = vunpack.c.l.b16 %v1048
        %v1081 = vunpack.c.l.b16 %v1049
        %v1082 = vunpack.c.l.b16 %v1050
        %v1083 = vunpack.c.l.b16 %v1051
        %v1084 = vunpack.c.l.b16 %v1052
        %v1085 = vunpack.c.l.b16 %v1053
        %v1086 = vunpack.c.l.b16 %v1054
        %v1087 = vunpack.c.l.b16 %v1055
        %v1088 = vpack.c.b16 %v1073, %v1072
        %v1089 = vpack.c.b16 %v1075, %v1074
        %v1090 = vpack.c.b16 %v1077, %v1076
        %v1091 = vpack.c.b16 %v1079, %v1078
        %v1092 = vpack.c.b16 %v1081, %v1080
        %v1093 = vpack.c.b16 %v1083, %v1082
        %v1094 = vpack.c.b16 %v1085, %v1084
        %v1095 = vpack.c.b16 %v1087, %v1086
        %1104 = vmatprep.subr.bf16.mxu0 0
        %1105 = vmatpush1.bf16.msra.mxu0 %v1088
        %1106 = vmatprep.subr.bf16.mxu0 0
        %1107 = vmatpush1.bf16.msra.mxu0 %v1089
        %1108 = vmatprep.subr.bf16.mxu0 0
        %1109 = vmatpush1.bf16.msra.mxu0 %v1090
        %1110 = vmatprep.subr.bf16.mxu0 0
        %1111 = vmatpush1.bf16.msra.mxu0 %v1091
        %1112 = vmatprep.subr.bf16.mxu0 0
        %1113 = vmatpush1.bf16.msra.mxu0 %v1092
        %1114 = vmatprep.subr.bf16.mxu0 0
        %1115 = vmatpush1.bf16.msra.mxu0 %v1093
        %1116 = vmatprep.subr.bf16.mxu0 0
        %1117 = vmatpush1.bf16.msra.mxu0 %v1094
        %1118 = vmatprep.subr.bf16.mxu0 0
        %1119 = vmatpush1.bf16.msra.mxu0 %v1095
        %1120 = vmatprep.subr.bf16.mxu0 0
        %1121 = vmatpush1.bf16.msra.mxu0 0
        %1122 = vmatprep.subr.bf16.mxu0 0
        %1123 = vmatpush1.bf16.msra.mxu0 0
        %1124 = vmatprep.subr.bf16.mxu0 0
        %1125 = vmatpush1.bf16.msra.mxu0 0
        %1126 = vmatprep.subr.bf16.mxu0 0
        %1127 = vmatpush1.bf16.msra.mxu0 0
        %1128 = vmatprep.subr.bf16.mxu0 0
        %1129 = vmatpush1.bf16.msra.mxu0 0
        %1130 = vmatprep.subr.bf16.mxu0 0
        %1131 = vmatpush1.bf16.msra.mxu0 0
        %1132 = vmatprep.subr.bf16.mxu0 0
        %1133 = vmatpush1.bf16.msra.mxu0 0
        %1134 = vmatprep.subr.bf16.mxu0 0
        %1135 = vmatpush1.bf16.msra.mxu0 0
        %1136 = vmatprep.mubr.bf16.mxu0 0
        %1137 = vmatmul.mubr.bf16.gmra.mrb[0].mxu0 %v1039
        %v1138 = vpop.f32.mrb[0].mxu0
        %v1139 = vadd.f32 0.0, %v1138
        %v1140 = vpop.f32.mrb[0].mxu0
        %v1141 = vpop.f32.mrb[0].mxu0
        %v1142 = vadd.f32 0.0, %v1141
        %v1143 = vpop.f32.mrb[0].mxu0
        %1144 = vdwg.mxu0
        %v1145 = vadd.f32 %v1022, %v1139
        %v1146 = vadd.f32 %v1023, %v1142
        %vm1147 = vcmp.ge.s32.totalorder %v657, 0
        %vm1148 = vcmp.ge.s32.totalorder %v658, 0
        %vm1149 = vcmp.lt.s32.totalorder %v657, 16
        %vm1150 = vcmp.lt.s32.totalorder %v658, 16
        %vm1151 = vmand %vm1147, %vm1149
        %vm1152 = vmand %vm1148, %vm1150
        %v1153 = vsel %vm1151, %v630, 0.0
        %v1154 = vsel %vm1152, %v631, 0.0
        %v1155 = vpack.c.bf16 %v1154, %v1153
        %v1156 = vld [vmem:[%s378 + $0x100] sm:$0xf]
        %v1157 = vld [vmem:[%s378 + $0x104] sm:$0xf]
        %v1158 = vld [vmem:[%s378 + $0x108] sm:$0xf]
        %v1159 = vld [vmem:[%s378 + $0x10c] sm:$0xf]
        %v1160 = vld [vmem:[%s378 + $0x110] sm:$0xf]
        %v1161 = vld [vmem:[%s378 + $0x114] sm:$0xf]
        %v1162 = vld [vmem:[%s378 + $0x118] sm:$0xf]
        %v1163 = vld [vmem:[%s378 + $0x11c] sm:$0xf]
        %v1164 = vld [vmem:[%s378 + $0x120] sm:$0xf]
        %v1165 = vld [vmem:[%s378 + $0x124] sm:$0xf]
        %v1166 = vld [vmem:[%s378 + $0x128] sm:$0xf]
        %v1167 = vld [vmem:[%s378 + $0x12c] sm:$0xf]
        %v1168 = vld [vmem:[%s378 + $0x130] sm:$0xf]
        %v1169 = vld [vmem:[%s378 + $0x134] sm:$0xf]
        %v1170 = vld [vmem:[%s378 + $0x138] sm:$0xf]
        %v1171 = vld [vmem:[%s378 + $0x13c] sm:$0xf]
        %v1188 = vunpack.c.l.b16 %v1156
        %v1189 = vunpack.c.l.b16 %v1157
        %v1190 = vunpack.c.l.b16 %v1158
        %v1191 = vunpack.c.l.b16 %v1159
        %v1192 = vunpack.c.l.b16 %v1160
        %v1193 = vunpack.c.l.b16 %v1161
        %v1194 = vunpack.c.l.b16 %v1162
        %v1195 = vunpack.c.l.b16 %v1163
        %v1196 = vunpack.c.l.b16 %v1164
        %v1197 = vunpack.c.l.b16 %v1165
        %v1198 = vunpack.c.l.b16 %v1166
        %v1199 = vunpack.c.l.b16 %v1167
        %v1200 = vunpack.c.l.b16 %v1168
        %v1201 = vunpack.c.l.b16 %v1169
        %v1202 = vunpack.c.l.b16 %v1170
        %v1203 = vunpack.c.l.b16 %v1171
        %v1204 = vpack.c.b16 %v1189, %v1188
        %v1205 = vpack.c.b16 %v1191, %v1190
        %v1206 = vpack.c.b16 %v1193, %v1192
        %v1207 = vpack.c.b16 %v1195, %v1194
        %v1208 = vpack.c.b16 %v1197, %v1196
        %v1209 = vpack.c.b16 %v1199, %v1198
        %v1210 = vpack.c.b16 %v1201, %v1200
        %v1211 = vpack.c.b16 %v1203, %v1202
        %1220 = vmatprep.subr.bf16.mxu0 0
        %1221 = vmatpush1.bf16.msra.mxu0 %v1204
        %1222 = vmatprep.subr.bf16.mxu0 0
        %1223 = vmatpush1.bf16.msra.mxu0 %v1205
        %1224 = vmatprep.subr.bf16.mxu0 0
        %1225 = vmatpush1.bf16.msra.mxu0 %v1206
        %1226 = vmatprep.subr.bf16.mxu0 0
        %1227 = vmatpush1.bf16.msra.mxu0 %v1207
        %1228 = vmatprep.subr.bf16.mxu0 0
        %1229 = vmatpush1.bf16.msra.mxu0 %v1208
        %1230 = vmatprep.subr.bf16.mxu0 0
        %1231 = vmatpush1.bf16.msra.mxu0 %v1209
        %1232 = vmatprep.subr.bf16.mxu0 0
        %1233 = vmatpush1.bf16.msra.mxu0 %v1210
        %1234 = vmatprep.subr.bf16.mxu0 0
        %1235 = vmatpush1.bf16.msra.mxu0 %v1211
        %1236 = vmatprep.subr.bf16.mxu0 0
        %1237 = vmatpush1.bf16.msra.mxu0 0
        %1238 = vmatprep.subr.bf16.mxu0 0
        %1239 = vmatpush1.bf16.msra.mxu0 0
        %1240 = vmatprep.subr.bf16.mxu0 0
        %1241 = vmatpush1.bf16.msra.mxu0 0
        %1242 = vmatprep.subr.bf16.mxu0 0
        %1243 = vmatpush1.bf16.msra.mxu0 0
        %1244 = vmatprep.subr.bf16.mxu0 0
        %1245 = vmatpush1.bf16.msra.mxu0 0
        %1246 = vmatprep.subr.bf16.mxu0 0
        %1247 = vmatpush1.bf16.msra.mxu0 0
        %1248 = vmatprep.subr.bf16.mxu0 0
        %1249 = vmatpush1.bf16.msra.mxu0 0
        %1250 = vmatprep.subr.bf16.mxu0 0
        %1251 = vmatpush1.bf16.msra.mxu0 0
        %1252 = vmatprep.mubr.bf16.mxu0 0
        %1253 = vmatmul.mubr.bf16.gmra.mrb[0].mxu0 %v1155
        %v1254 = vpop.f32.mrb[0].mxu0
        %v1255 = vadd.f32 0.0, %v1254
        %v1256 = vpop.f32.mrb[0].mxu0
        %v1257 = vpop.f32.mrb[0].mxu0
        %v1258 = vadd.f32 0.0, %v1257
        %v1259 = vpop.f32.mrb[0].mxu0
        %1260 = vdwg.mxu0
        %v1261 = vadd.f32 %v1145, %v1255
        %v1262 = vadd.f32 %v1146, %v1258
        %v1263 = vrot.slane %v630, 1
        %v1264 = vrot.slane %v631, 1
        %vm1265 = vcmp.lt.s32.totalorder %v633, 7
        %v1266 = vsel %vm1265, %v1263, %v1264
        %v1267 = vsel %vm1265, %v1264, %v1263
        %v1268 = vadd.s32 %v657, 1
        %v1269 = vadd.s32 %v658, 1
        %vm1270 = vcmp.ge.s32.totalorder %v1268, 0
        %vm1271 = vcmp.ge.s32.totalorder %v1269, 0
        %vm1272 = vcmp.lt.s32.totalorder %v1268, 16
        %vm1273 = vcmp.lt.s32.totalorder %v1269, 16
        %vm1274 = vmand %vm1270, %vm1272
        %vm1275 = vmand %vm1271, %vm1273
        %v1276 = vsel %vm1274, %v1266, 0.0
        %v1277 = vsel %vm1275, %v1267, 0.0
        %v1278 = vpack.c.bf16 %v1277, %v1276
        %v1279 = vld [vmem:[%s378 + $0x140] sm:$0xf]
        %v1280 = vld [vmem:[%s378 + $0x144] sm:$0xf]
        %v1281 = vld [vmem:[%s378 + $0x148] sm:$0xf]
        %v1282 = vld [vmem:[%s378 + $0x14c] sm:$0xf]
        %v1283 = vld [vmem:[%s378 + $0x150] sm:$0xf]
        %v1284 = vld [vmem:[%s378 + $0x154] sm:$0xf]
        %v1285 = vld [vmem:[%s378 + $0x158] sm:$0xf]
        %v1286 = vld [vmem:[%s378 + $0x15c] sm:$0xf]
        %v1287 = vld [vmem:[%s378 + $0x160] sm:$0xf]
        %v1288 = vld [vmem:[%s378 + $0x164] sm:$0xf]
        %v1289 = vld [vmem:[%s378 + $0x168] sm:$0xf]
        %v1290 = vld [vmem:[%s378 + $0x16c] sm:$0xf]
        %v1291 = vld [vmem:[%s378 + $0x170] sm:$0xf]
        %v1292 = vld [vmem:[%s378 + $0x174] sm:$0xf]
        %v1293 = vld [vmem:[%s378 + $0x178] sm:$0xf]
        %v1294 = vld [vmem:[%s378 + $0x17c] sm:$0xf]
        %v1311 = vunpack.c.l.b16 %v1279
        %v1312 = vunpack.c.l.b16 %v1280
        %v1313 = vunpack.c.l.b16 %v1281
        %v1314 = vunpack.c.l.b16 %v1282
        %v1315 = vunpack.c.l.b16 %v1283
        %v1316 = vunpack.c.l.b16 %v1284
        %v1317 = vunpack.c.l.b16 %v1285
        %v1318 = vunpack.c.l.b16 %v1286
        %v1319 = vunpack.c.l.b16 %v1287
        %v1320 = vunpack.c.l.b16 %v1288
        %v1321 = vunpack.c.l.b16 %v1289
        %v1322 = vunpack.c.l.b16 %v1290
        %v1323 = vunpack.c.l.b16 %v1291
        %v1324 = vunpack.c.l.b16 %v1292
        %v1325 = vunpack.c.l.b16 %v1293
        %v1326 = vunpack.c.l.b16 %v1294
        %v1327 = vpack.c.b16 %v1312, %v1311
        %v1328 = vpack.c.b16 %v1314, %v1313
        %v1329 = vpack.c.b16 %v1316, %v1315
        %v1330 = vpack.c.b16 %v1318, %v1317
        %v1331 = vpack.c.b16 %v1320, %v1319
        %v1332 = vpack.c.b16 %v1322, %v1321
        %v1333 = vpack.c.b16 %v1324, %v1323
        %v1334 = vpack.c.b16 %v1326, %v1325
        %1343 = vmatprep.subr.bf16.mxu0 0
        %1344 = vmatpush1.bf16.msra.mxu0 %v1327
        %1345 = vmatprep.subr.bf16.mxu0 0
        %1346 = vmatpush1.bf16.msra.mxu0 %v1328
        %1347 = vmatprep.subr.bf16.mxu0 0
        %1348 = vmatpush1.bf16.msra.mxu0 %v1329
        %1349 = vmatprep.subr.bf16.mxu0 0
        %1350 = vmatpush1.bf16.msra.mxu0 %v1330
        %1351 = vmatprep.subr.bf16.mxu0 0
        %1352 = vmatpush1.bf16.msra.mxu0 %v1331
        %1353 = vmatprep.subr.bf16.mxu0 0
        %1354 = vmatpush1.bf16.msra.mxu0 %v1332
        %1355 = vmatprep.subr.bf16.mxu0 0
        %1356 = vmatpush1.bf16.msra.mxu0 %v1333
        %1357 = vmatprep.subr.bf16.mxu0 0
        %1358 = vmatpush1.bf16.msra.mxu0 %v1334
        %1359 = vmatprep.subr.bf16.mxu0 0
        %1360 = vmatpush1.bf16.msra.mxu0 0
        %1361 = vmatprep.subr.bf16.mxu0 0
        %1362 = vmatpush1.bf16.msra.mxu0 0
        %1363 = vmatprep.subr.bf16.mxu0 0
        %1364 = vmatpush1.bf16.msra.mxu0 0
        %1365 = vmatprep.subr.bf16.mxu0 0
        %1366 = vmatpush1.bf16.msra.mxu0 0
        %1367 = vmatprep.subr.bf16.mxu0 0
        %1368 = vmatpush1.bf16.msra.mxu0 0
        %1369 = vmatprep.subr.bf16.mxu0 0
        %1370 = vmatpush1.bf16.msra.mxu0 0
        %1371 = vmatprep.subr.bf16.mxu0 0
        %1372 = vmatpush1.bf16.msra.mxu0 0
        %1373 = vmatprep.subr.bf16.mxu0 0
        %1374 = vmatpush1.bf16.msra.mxu0 0
        %1375 = vmatprep.mubr.bf16.mxu0 0
        %1376 = vmatmul.mubr.bf16.gmra.mrb[0].mxu0 %v1278
        %v1377 = vpop.f32.mrb[0].mxu0
        %v1378 = vadd.f32 0.0, %v1377
        %v1379 = vpop.f32.mrb[0].mxu0
        %v1380 = vpop.f32.mrb[0].mxu0
        %v1381 = vadd.f32 0.0, %v1380
        %v1382 = vpop.f32.mrb[0].mxu0
        %1383 = vdwg.mxu0
        %v1384 = vadd.f32 %v1261, %v1378
        %v1385 = vadd.f32 %v1262, %v1381
        %v1386 = vrot.slane %v630, 2
        %v1387 = vrot.slane %v631, 2
        %vm1388 = vcmp.lt.s32.totalorder %v633, 6
        %v1389 = vsel %vm1388, %v1386, %v1387
        %v1390 = vsel %vm1388, %v1387, %v1386
        %v1391 = vadd.s32 %v657, 2
        %v1392 = vadd.s32 %v658, 2
        %vm1393 = vcmp.ge.s32.totalorder %v1391, 0
        %vm1394 = vcmp.ge.s32.totalorder %v1392, 0
        %vm1395 = vcmp.lt.s32.totalorder %v1391, 16
        %vm1396 = vcmp.lt.s32.totalorder %v1392, 16
        %vm1397 = vmand %vm1393, %vm1395
        %vm1398 = vmand %vm1394, %vm1396
        %v1399 = vsel %vm1397, %v1389, 0.0
        %v1400 = vsel %vm1398, %v1390, 0.0
        %v1401 = vpack.c.bf16 %v1400, %v1399
        %v1402 = vld [vmem:[%s378 + $0x180] sm:$0xf]
        %v1403 = vld [vmem:[%s378 + $0x184] sm:$0xf]
        %v1404 = vld [vmem:[%s378 + $0x188] sm:$0xf]
        %v1405 = vld [vmem:[%s378 + $0x18c] sm:$0xf]
        %v1406 = vld [vmem:[%s378 + $0x190] sm:$0xf]
        %v1407 = vld [vmem:[%s378 + $0x194] sm:$0xf]
        %v1408 = vld [vmem:[%s378 + $0x198] sm:$0xf]
        %v1409 = vld [vmem:[%s378 + $0x19c] sm:$0xf]
        %v1410 = vld [vmem:[%s378 + $0x1a0] sm:$0xf]
        %v1411 = vld [vmem:[%s378 + $0x1a4] sm:$0xf]
        %v1412 = vld [vmem:[%s378 + $0x1a8] sm:$0xf]
        %v1413 = vld [vmem:[%s378 + $0x1ac] sm:$0xf]
        %v1414 = vld [vmem:[%s378 + $0x1b0] sm:$0xf]
        %v1415 = vld [vmem:[%s378 + $0x1b4] sm:$0xf]
        %v1416 = vld [vmem:[%s378 + $0x1b8] sm:$0xf]
        %v1417 = vld [vmem:[%s378 + $0x1bc] sm:$0xf]
        %v1434 = vunpack.c.l.b16 %v1402
        %v1435 = vunpack.c.l.b16 %v1403
        %v1436 = vunpack.c.l.b16 %v1404
        %v1437 = vunpack.c.l.b16 %v1405
        %v1438 = vunpack.c.l.b16 %v1406
        %v1439 = vunpack.c.l.b16 %v1407
        %v1440 = vunpack.c.l.b16 %v1408
        %v1441 = vunpack.c.l.b16 %v1409
        %v1442 = vunpack.c.l.b16 %v1410
        %v1443 = vunpack.c.l.b16 %v1411
        %v1444 = vunpack.c.l.b16 %v1412
        %v1445 = vunpack.c.l.b16 %v1413
        %v1446 = vunpack.c.l.b16 %v1414
        %v1447 = vunpack.c.l.b16 %v1415
        %v1448 = vunpack.c.l.b16 %v1416
        %v1449 = vunpack.c.l.b16 %v1417
        %v1450 = vpack.c.b16 %v1435, %v1434
        %v1451 = vpack.c.b16 %v1437, %v1436
        %v1452 = vpack.c.b16 %v1439, %v1438
        %v1453 = vpack.c.b16 %v1441, %v1440
        %v1454 = vpack.c.b16 %v1443, %v1442
        %v1455 = vpack.c.b16 %v1445, %v1444
        %v1456 = vpack.c.b16 %v1447, %v1446
        %v1457 = vpack.c.b16 %v1449, %v1448
        %1466 = vmatprep.subr.bf16.mxu0 0
        %1467 = vmatpush1.bf16.msra.mxu0 %v1450
        %1468 = vmatprep.subr.bf16.mxu0 0
        %1469 = vmatpush1.bf16.msra.mxu0 %v1451
        %1470 = vmatprep.subr.bf16.mxu0 0
        %1471 = vmatpush1.bf16.msra.mxu0 %v1452
        %1472 = vmatprep.subr.bf16.mxu0 0
        %1473 = vmatpush1.bf16.msra.mxu0 %v1453
        %1474 = vmatprep.subr.bf16.mxu0 0
        %1475 = vmatpush1.bf16.msra.mxu0 %v1454
        %1476 = vmatprep.subr.bf16.mxu0 0
        %1477 = vmatpush1.bf16.msra.mxu0 %v1455
        %1478 = vmatprep.subr.bf16.mxu0 0
        %1479 = vmatpush1.bf16.msra.mxu0 %v1456
        %1480 = vmatprep.subr.bf16.mxu0 0
        %1481 = vmatpush1.bf16.msra.mxu0 %v1457
        %1482 = vmatprep.subr.bf16.mxu0 0
        %1483 = vmatpush1.bf16.msra.mxu0 0
        %1484 = vmatprep.subr.bf16.mxu0 0
        %1485 = vmatpush1.bf16.msra.mxu0 0
        %1486 = vmatprep.subr.bf16.mxu0 0
        %1487 = vmatpush1.bf16.msra.mxu0 0
        %1488 = vmatprep.subr.bf16.mxu0 0
        %1489 = vmatpush1.bf16.msra.mxu0 0
        %1490 = vmatprep.subr.bf16.mxu0 0
        %1491 = vmatpush1.bf16.msra.mxu0 0
        %1492 = vmatprep.subr.bf16.mxu0 0
        %1493 = vmatpush1.bf16.msra.mxu0 0
        %1494 = vmatprep.subr.bf16.mxu0 0
        %1495 = vmatpush1.bf16.msra.mxu0 0
        %1496 = vmatprep.subr.bf16.mxu0 0
        %1497 = vmatpush1.bf16.msra.mxu0 0
        %1498 = vmatprep.mubr.bf16.mxu0 0
        %1499 = vmatmul.mubr.bf16.gmra.mrb[0].mxu0 %v1401
        %v1500 = vpop.f32.mrb[0].mxu0
        %v1501 = vadd.f32 0.0, %v1500
        %v1502 = vpop.f32.mrb[0].mxu0
        %v1503 = vpop.f32.mrb[0].mxu0
        %v1504 = vadd.f32 0.0, %v1503
        %v1505 = vpop.f32.mrb[0].mxu0
        %1506 = vdwg.mxu0
        %v1507 = vadd.f32 %v1384, %v1501
        %v1508 = vadd.f32 %v1385, %v1504
        %v1509 = vrot.slane %v630, 3
        %v1510 = vrot.slane %v631, 3
        %vm1511 = vcmp.lt.s32.totalorder %v633, 5
        %v1512 = vsel %vm1511, %v1509, %v1510
        %v1513 = vsel %vm1511, %v1510, %v1509
        %v1514 = vadd.s32 %v657, 3
        %v1515 = vadd.s32 %v658, 3
        %vm1516 = vcmp.ge.s32.totalorder %v1514, 0
        %vm1517 = vcmp.ge.s32.totalorder %v1515, 0
        %vm1518 = vcmp.lt.s32.totalorder %v1514, 16
        %vm1519 = vcmp.lt.s32.totalorder %v1515, 16
        %vm1520 = vmand %vm1516, %vm1518
        %vm1521 = vmand %vm1517, %vm1519
        %v1522 = vsel %vm1520, %v1512, 0.0
        %v1523 = vsel %vm1521, %v1513, 0.0
        %v1524 = vpack.c.bf16 %v1523, %v1522
        %v1525 = vld [vmem:[%s378 + $0x1c0] sm:$0xf]
        %v1526 = vld [vmem:[%s378 + $0x1c4] sm:$0xf]
        %v1527 = vld [vmem:[%s378 + $0x1c8] sm:$0xf]
        %v1528 = vld [vmem:[%s378 + $0x1cc] sm:$0xf]
        %v1529 = vld [vmem:[%s378 + $0x1d0] sm:$0xf]
        %v1530 = vld [vmem:[%s378 + $0x1d4] sm:$0xf]
        %v1531 = vld [vmem:[%s378 + $0x1d8] sm:$0xf]
        %v1532 = vld [vmem:[%s378 + $0x1dc] sm:$0xf]
        %v1533 = vld [vmem:[%s378 + $0x1e0] sm:$0xf]
        %v1534 = vld [vmem:[%s378 + $0x1e4] sm:$0xf]
        %v1535 = vld [vmem:[%s378 + $0x1e8] sm:$0xf]
        %v1536 = vld [vmem:[%s378 + $0x1ec] sm:$0xf]
        %v1537 = vld [vmem:[%s378 + $0x1f0] sm:$0xf]
        %v1538 = vld [vmem:[%s378 + $0x1f4] sm:$0xf]
        %v1539 = vld [vmem:[%s378 + $0x1f8] sm:$0xf]
        %v1540 = vld [vmem:[%s378 + $0x1fc] sm:$0xf]
        %v1557 = vunpack.c.l.b16 %v1525
        %v1558 = vunpack.c.l.b16 %v1526
        %v1559 = vunpack.c.l.b16 %v1527
        %v1560 = vunpack.c.l.b16 %v1528
        %v1561 = vunpack.c.l.b16 %v1529
        %v1562 = vunpack.c.l.b16 %v1530
        %v1563 = vunpack.c.l.b16 %v1531
        %v1564 = vunpack.c.l.b16 %v1532
        %v1565 = vunpack.c.l.b16 %v1533
        %v1566 = vunpack.c.l.b16 %v1534
        %v1567 = vunpack.c.l.b16 %v1535
        %v1568 = vunpack.c.l.b16 %v1536
        %v1569 = vunpack.c.l.b16 %v1537
        %v1570 = vunpack.c.l.b16 %v1538
        %v1571 = vunpack.c.l.b16 %v1539
        %v1572 = vunpack.c.l.b16 %v1540
        %v1573 = vpack.c.b16 %v1558, %v1557
        %v1574 = vpack.c.b16 %v1560, %v1559
        %v1575 = vpack.c.b16 %v1562, %v1561
        %v1576 = vpack.c.b16 %v1564, %v1563
        %v1577 = vpack.c.b16 %v1566, %v1565
        %v1578 = vpack.c.b16 %v1568, %v1567
        %v1579 = vpack.c.b16 %v1570, %v1569
        %v1580 = vpack.c.b16 %v1572, %v1571
        %1589 = vmatprep.subr.bf16.mxu0 0
        %1590 = vmatpush1.bf16.msra.mxu0 %v1573
        %1591 = vmatprep.subr.bf16.mxu0 0
        %1592 = vmatpush1.bf16.msra.mxu0 %v1574
        %1593 = vmatprep.subr.bf16.mxu0 0
        %1594 = vmatpush1.bf16.msra.mxu0 %v1575
        %1595 = vmatprep.subr.bf16.mxu0 0
        %1596 = vmatpush1.bf16.msra.mxu0 %v1576
        %1597 = vmatprep.subr.bf16.mxu0 0
        %1598 = vmatpush1.bf16.msra.mxu0 %v1577
        %1599 = vmatprep.subr.bf16.mxu0 0
        %1600 = vmatpush1.bf16.msra.mxu0 %v1578
        %1601 = vmatprep.subr.bf16.mxu0 0
        %1602 = vmatpush1.bf16.msra.mxu0 %v1579
        %1603 = vmatprep.subr.bf16.mxu0 0
        %1604 = vmatpush1.bf16.msra.mxu0 %v1580
        %1605 = vmatprep.subr.bf16.mxu0 0
        %1606 = vmatpush1.bf16.msra.mxu0 0
        %1607 = vmatprep.subr.bf16.mxu0 0
        %1608 = vmatpush1.bf16.msra.mxu0 0
        %1609 = vmatprep.subr.bf16.mxu0 0
        %1610 = vmatpush1.bf16.msra.mxu0 0
        %1611 = vmatprep.subr.bf16.mxu0 0
        %1612 = vmatpush1.bf16.msra.mxu0 0
        %1613 = vmatprep.subr.bf16.mxu0 0
        %1614 = vmatpush1.bf16.msra.mxu0 0
        %1615 = vmatprep.subr.bf16.mxu0 0
        %1616 = vmatpush1.bf16.msra.mxu0 0
        %1617 = vmatprep.subr.bf16.mxu0 0
        %1618 = vmatpush1.bf16.msra.mxu0 0
        %1619 = vmatprep.subr.bf16.mxu0 0
        %1620 = vmatpush1.bf16.msra.mxu0 0
        %1621 = vmatprep.mubr.bf16.mxu0 0
        %1622 = vmatmul.mubr.bf16.gmra.mrb[0].mxu0 %v1524
        %v1623 = vpop.f32.mrb[0].mxu0
        %v1624 = vadd.f32 0.0, %v1623
        %v1625 = vpop.f32.mrb[0].mxu0
        %v1626 = vpop.f32.mrb[0].mxu0
        %v1627 = vadd.f32 0.0, %v1626
        %v1628 = vpop.f32.mrb[0].mxu0
        %1629 = vdwg.mxu0
        %v1630 = vadd.f32 %v1507, %v1624
        %v1631 = vadd.f32 %v1508, %v1627
        %v1632 = vadd.s32 %v657, 4
        %v1633 = vadd.s32 %v658, 4
        %vm1634 = vcmp.ge.s32.totalorder %v1632, 0
        %vm1635 = vcmp.ge.s32.totalorder %v1633, 0
        %vm1636 = vcmp.lt.s32.totalorder %v1632, 16
        %vm1637 = vcmp.lt.s32.totalorder %v1633, 16
        %vm1638 = vmand %vm1634, %vm1636
        %vm1639 = vmand %vm1635, %vm1637
        %v1640 = vsel %vm1638, %v662, 0.0
        %v1641 = vsel %vm1639, %v663, 0.0
        %v1642 = vpack.c.bf16 %v1641, %v1640
        %v1643 = vld [vmem:[%s378 + $0x200] sm:$0xf]
        %v1644 = vld [vmem:[%s378 + $0x204] sm:$0xf]
        %v1645 = vld [vmem:[%s378 + $0x208] sm:$0xf]
        %v1646 = vld [vmem:[%s378 + $0x20c] sm:$0xf]
        %v1647 = vld [vmem:[%s378 + $0x210] sm:$0xf]
        %v1648 = vld [vmem:[%s378 + $0x214] sm:$0xf]
        %v1649 = vld [vmem:[%s378 + $0x218] sm:$0xf]
        %v1650 = vld [vmem:[%s378 + $0x21c] sm:$0xf]
        %v1651 = vld [vmem:[%s378 + $0x220] sm:$0xf]
        %v1652 = vld [vmem:[%s378 + $0x224] sm:$0xf]
        %v1653 = vld [vmem:[%s378 + $0x228] sm:$0xf]
        %v1654 = vld [vmem:[%s378 + $0x22c] sm:$0xf]
        %v1655 = vld [vmem:[%s378 + $0x230] sm:$0xf]
        %v1656 = vld [vmem:[%s378 + $0x234] sm:$0xf]
        %v1657 = vld [vmem:[%s378 + $0x238] sm:$0xf]
        %v1658 = vld [vmem:[%s378 + $0x23c] sm:$0xf]
        %v1675 = vunpack.c.l.b16 %v1643
        %v1676 = vunpack.c.l.b16 %v1644
        %v1677 = vunpack.c.l.b16 %v1645
        %v1678 = vunpack.c.l.b16 %v1646
        %v1679 = vunpack.c.l.b16 %v1647
        %v1680 = vunpack.c.l.b16 %v1648
        %v1681 = vunpack.c.l.b16 %v1649
        %v1682 = vunpack.c.l.b16 %v1650
        %v1683 = vunpack.c.l.b16 %v1651
        %v1684 = vunpack.c.l.b16 %v1652
        %v1685 = vunpack.c.l.b16 %v1653
        %v1686 = vunpack.c.l.b16 %v1654
        %v1687 = vunpack.c.l.b16 %v1655
        %v1688 = vunpack.c.l.b16 %v1656
        %v1689 = vunpack.c.l.b16 %v1657
        %v1690 = vunpack.c.l.b16 %v1658
        %v1691 = vpack.c.b16 %v1676, %v1675
        %v1692 = vpack.c.b16 %v1678, %v1677
        %v1693 = vpack.c.b16 %v1680, %v1679
        %v1694 = vpack.c.b16 %v1682, %v1681
        %v1695 = vpack.c.b16 %v1684, %v1683
        %v1696 = vpack.c.b16 %v1686, %v1685
        %v1697 = vpack.c.b16 %v1688, %v1687
        %v1698 = vpack.c.b16 %v1690, %v1689
        %1707 = vmatprep.subr.bf16.mxu0 0
        %1708 = vmatpush1.bf16.msra.mxu0 %v1691
        %1709 = vmatprep.subr.bf16.mxu0 0
        %1710 = vmatpush1.bf16.msra.mxu0 %v1692
        %1711 = vmatprep.subr.bf16.mxu0 0
        %1712 = vmatpush1.bf16.msra.mxu0 %v1693
        %1713 = vmatprep.subr.bf16.mxu0 0
        %1714 = vmatpush1.bf16.msra.mxu0 %v1694
        %1715 = vmatprep.subr.bf16.mxu0 0
        %1716 = vmatpush1.bf16.msra.mxu0 %v1695
        %1717 = vmatprep.subr.bf16.mxu0 0
        %1718 = vmatpush1.bf16.msra.mxu0 %v1696
        %1719 = vmatprep.subr.bf16.mxu0 0
        %1720 = vmatpush1.bf16.msra.mxu0 %v1697
        %1721 = vmatprep.subr.bf16.mxu0 0
        %1722 = vmatpush1.bf16.msra.mxu0 %v1698
        %1723 = vmatprep.subr.bf16.mxu0 0
        %1724 = vmatpush1.bf16.msra.mxu0 0
        %1725 = vmatprep.subr.bf16.mxu0 0
        %1726 = vmatpush1.bf16.msra.mxu0 0
        %1727 = vmatprep.subr.bf16.mxu0 0
        %1728 = vmatpush1.bf16.msra.mxu0 0
        %1729 = vmatprep.subr.bf16.mxu0 0
        %1730 = vmatpush1.bf16.msra.mxu0 0
        %1731 = vmatprep.subr.bf16.mxu0 0
        %1732 = vmatpush1.bf16.msra.mxu0 0
        %1733 = vmatprep.subr.bf16.mxu0 0
        %1734 = vmatpush1.bf16.msra.mxu0 0
        %1735 = vmatprep.subr.bf16.mxu0 0
        %1736 = vmatpush1.bf16.msra.mxu0 0
        %1737 = vmatprep.subr.bf16.mxu0 0
        %1738 = vmatpush1.bf16.msra.mxu0 0
        %1739 = vmatprep.mubr.bf16.mxu0 0
        %1740 = vmatmul.mubr.bf16.gmra.mrb[0].mxu0 %v1642
        %v1741 = vpop.f32.mrb[0].mxu0
        %v1742 = vadd.f32 0.0, %v1741
        %v1743 = vpop.f32.mrb[0].mxu0
        %v1744 = vpop.f32.mrb[0].mxu0
        %v1745 = vadd.f32 0.0, %v1744
        %v1746 = vpop.f32.mrb[0].mxu0
        %1747 = vdwg.mxu0
        %v1748 = vadd.f32 %v1630, %v1742
        %v1749 = vadd.f32 %v1631, %v1745
        %v1750 = vld [vmem:[%s386] sm:$0x1]
        %v1752 = vlaneseq
        %v1753 = vshrl.u32 %v1752, 7
        %v1754 = vsub.s32 0, %v1753
        %v1755 = vrot.slane %v1750, %v1754
        %v1757 = vadd.f32 %v1748, %v1755
        %v1758 = vadd.f32 %v1749, %v1755
        %v1759 = vadd.f32 %v1757, %v606
        %v1760 = vadd.f32 %v1758, %v609
        %p1761 = scmp.gt.s32.totalorder %s29, 4
        %p1762 = scmp.le.s32.totalorder %s29, 8
        %p1763 = pnand %p1761, %p1762
        %p1764 = pneg %p1763
        %p1765 = scmp.eq.s32.totalorder %s29, 9
        %p1766 = por %p1764, %p1765
        %p1767 = pneg %p1766
        // Predicated region
        $region73: #{tpu_custom_call.1} parent=43 // pred_check
          _
        $region74: #{tpu_custom_call.1} parent=43 // pred_check_branch
          %1769 = sbr.rel (%p1766) target = $region76
        $region75: #{tpu_custom_call.1} parent=43 // pred_region
          %1770 = vst [vmem:[#allocation2] sm:$0xff] %v1759
          %1771 = vst [vmem:[#allocation2 + $0x8] sm:$0xff] %v1760
        $region76: #{tpu_custom_call.1} parent=43 // pred_fallthru
          _
        // Predicated region
        $region77: #{tpu_custom_call.1} parent=43 // pred_check
          %p1772 = pneg %p436
        $region78: #{tpu_custom_call.1} parent=43 // pred_check_branch
          %1774 = sbr.rel (%p1772) target = $region80
        $region79: #{tpu_custom_call.1} parent=43 // pred_region
          %v1775 = vpack.c.bf16 %v1760, %v1759
          %1776 = vst [vmem:[#allocation3] sm:$0xff] %v1775
        $region80: #{tpu_custom_call.1} parent=43 // pred_fallthru
          _
        %p1777 = scmp.eq.s32.totalorder %s29, 1
        // Predicated region
        $region81: #{tpu_custom_call.1} parent=43 // pred_check
          %p1778 = pneg %p1777
        $region82: #{tpu_custom_call.1} parent=43 // pred_check_branch
          %1780 = sbr.rel (%p1778) target = $region84
        $region83: #{tpu_custom_call.1} parent=43 // pred_region
          %v1781 = vpack.c.bf16 %v1760, %v1759
          %s1782 = scalar_lea.vmem [#allocation3], 8
          %1783 = vst [vmem:[%s1782] sm:$0xff] %v1781
        $region84: #{tpu_custom_call.1} parent=43 // pred_fallthru
          _
        %p1784 = scmp.eq.s32.totalorder %s29, 2
        // Predicated region
        $region85: #{tpu_custom_call.1} parent=43 // pred_check
          %p1785 = pneg %p1784
        $region86: #{tpu_custom_call.1} parent=43 // pred_check_branch
          %1787 = sbr.rel (%p1785) target = $region88
        $region87: #{tpu_custom_call.1} parent=43 // pred_region
          %v1788 = vpack.c.bf16 %v1760, %v1759
          %s1789 = scalar_lea.vmem [#allocation3], 16
          %1790 = vst [vmem:[%s1789] sm:$0xff] %v1788
        $region88: #{tpu_custom_call.1} parent=43 // pred_fallthru
          _
        %p1791 = scmp.eq.s32.totalorder %s29, 3
        // Predicated region
        $region89: #{tpu_custom_call.1} parent=43 // pred_check
          %p1792 = pneg %p1791
        $region90: #{tpu_custom_call.1} parent=43 // pred_check_branch
          %1794 = sbr.rel (%p1792) target = $region92
        $region91: #{tpu_custom_call.1} parent=43 // pred_region
          %v1795 = vpack.c.bf16 %v1760, %v1759
          %s1796 = scalar_lea.vmem [#allocation3], 24
          %1797 = vst [vmem:[%s1796] sm:$0xff] %v1795
        $region92: #{tpu_custom_call.1} parent=43 // pred_fallthru
          _
        %p1798 = scmp.eq.s32.totalorder %s29, 5
        // Predicated region
        $region93: #{tpu_custom_call.1} parent=43 // pred_check
          %p1799 = pneg %p1798
        $region94: #{tpu_custom_call.1} parent=43 // pred_check_branch
          %1801 = sbr.rel (%p1799) target = $region96
        $region95: #{tpu_custom_call.1} parent=43 // pred_region
          %s1802 = scalar_lea.vmem [#allocation3], 24
          %v1803 = vld [vmem:[%s1802] sm:$0xff]
          %v1804 = vunpack.c.l.bf16 %v1803
          %v1805 = vunpack.c.h.bf16 %v1803
          %v1806 = vadd.f32 %v1759, %v1804
          %v1807 = vadd.f32 %v1760, %v1805
          %1808 = vst [vmem:[#allocation2] sm:$0xff] %v1806
          %1809 = vst [vmem:[#allocation2 + $0x8] sm:$0xff] %v1807
        $region96: #{tpu_custom_call.1} parent=43 // pred_fallthru
          _
        %p1810 = scmp.eq.s32.totalorder %s29, 6
        // Predicated region
        $region97: #{tpu_custom_call.1} parent=43 // pred_check
          %p1811 = pneg %p1810
        $region98: #{tpu_custom_call.1} parent=43 // pred_check_branch
          %1813 = sbr.rel (%p1811) target = $region100
        $region99: #{tpu_custom_call.1} parent=43 // pred_region
          %s1814 = scalar_lea.vmem [#allocation3], 16
          %v1815 = vld [vmem:[%s1814] sm:$0xff]
          %v1816 = vunpack.c.l.bf16 %v1815
          %v1817 = vunpack.c.h.bf16 %v1815
          %v1818 = vadd.f32 %v1759, %v1816
          %v1819 = vadd.f32 %v1760, %v1817
          %1820 = vst [vmem:[#allocation2] sm:$0xff] %v1818
          %1821 = vst [vmem:[#allocation2 + $0x8] sm:$0xff] %v1819
        $region100: #{tpu_custom_call.1} parent=43 // pred_fallthru
          _
        %p1822 = scmp.eq.s32.totalorder %s29, 7
        // Predicated region
        $region101: #{tpu_custom_call.1} parent=43 // pred_check
          %p1823 = pneg %p1822
        $region102: #{tpu_custom_call.1} parent=43 // pred_check_branch
          %1825 = sbr.rel (%p1823) target = $region104
        $region103: #{tpu_custom_call.1} parent=43 // pred_region
          %s1826 = scalar_lea.vmem [#allocation3], 8
          %v1827 = vld [vmem:[%s1826] sm:$0xff]
          %v1828 = vunpack.c.l.bf16 %v1827
          %v1829 = vunpack.c.h.bf16 %v1827
          %v1830 = vadd.f32 %v1759, %v1828
          %v1831 = vadd.f32 %v1760, %v1829
          %1832 = vst [vmem:[#allocation2] sm:$0xff] %v1830
          %1833 = vst [vmem:[#allocation2 + $0x8] sm:$0xff] %v1831
        $region104: #{tpu_custom_call.1} parent=43 // pred_fallthru
          _
        %p1834 = scmp.eq.s32.totalorder %s29, 8
        // Predicated region
        $region105: #{tpu_custom_call.1} parent=43 // pred_check
          %p1835 = pneg %p1834
        $region106: #{tpu_custom_call.1} parent=43 // pred_check_branch
          %1837 = sbr.rel (%p1835) target = $region108
        $region107: #{tpu_custom_call.1} parent=43 // pred_region
          %v1838 = vld [vmem:[#allocation3] sm:$0xff]
          %v1839 = vunpack.c.l.bf16 %v1838
          %v1840 = vunpack.c.h.bf16 %v1838
          %v1841 = vadd.f32 %v1759, %v1839
          %v1842 = vadd.f32 %v1760, %v1840
          %1843 = vst [vmem:[#allocation2] sm:$0xff] %v1841
          %1844 = vst [vmem:[#allocation2 + $0x8] sm:$0xff] %v1842
        $region108: #{tpu_custom_call.1} parent=43 // pred_fallthru
          _
        // Predicated region
        $region109: #{tpu_custom_call.1} parent=43 // pred_check
          %p1845 = pneg %p1765
        $region110: #{tpu_custom_call.1} parent=43 // pred_check_branch
          %1847 = sbr.rel (%p1845) target = $region112
        $region111: #{tpu_custom_call.1} parent=43 // pred_region
          %1848 = vst [vmem:[%s432] sm:$0xff] %v1759
          %1849 = vst [vmem:[%s432 + $0x8] sm:$0xff] %v1760
        $region112: #{tpu_custom_call.1} parent=43 // pred_fallthru
          _
        %s1850 = sand.u32 %s195, 1
        %s1851 = scalar_lea.sflag [#allocation6], %s1850
        %s1852 = sand.u32 %s195, 1
        %s1853 = smul.addr %s1852, 16
        %s1854 = scalar_lea.vmem [#allocation13], %s1853
        // Predicated region
        $region113: #{tpu_custom_call.1} parent=43 // pred_check
          %p1855 = pneg %p205
        $region114: #{tpu_custom_call.1} parent=43 // pred_check_branch
          %1857 = sbr.rel (%p1855) target = $region116
        $region115: #{tpu_custom_call.1} parent=43 // pred_region
          %s1858 = smul.u32 2, %s28
          %s1860 = ssub.s32 256, 256
          %1861 = vsyncadd %s1851, %s1860
          %s1862 = smul.addr %s1858, 128
          %s1863 = scalar_lea.hbm %s6, %s1862
          %s1864 = sshll.u32 %s1854, 4
          %s1865 = int_to_ptr.vmem [resolvable:$true] %s1864
          %1870 = dma.vmem_to_hbm [thread:$0]  %s1865, 256, %s1863, %s1851, 128, 128, 8
        $region116: #{tpu_custom_call.1} parent=43 // pred_fallthru
          _
      $region44: #{tpu_custom_call.1} parent=5 // pred_fallthru
        _
      %p1871 = scmp.le.s32.totalorder 2, %s19
      // Predicated region
      $region117: #{tpu_custom_call.1} parent=5 // pred_check
        %p1872 = pneg %p1871
      $region118: #{tpu_custom_call.1} parent=5 // pred_check_branch
        %1874 = sbr.rel (%p1872) target = $region120
      $region119: #{tpu_custom_call.1} parent=5 // pred_region
        %s1875 = ssub.s32 %s19, 2
        // Predicated region
        $region121: #{tpu_custom_call.1} parent=119 // pred_check
          %p1876 = pneg %p211
        $region122: #{tpu_custom_call.1} parent=119 // pred_check_branch
          %1878 = sbr.rel (%p1876) target = $region124
        $region123: #{tpu_custom_call.1} parent=119 // pred_region
          %s1879 = sand.u32 %s196, 1
          %s1880 = scalar_lea.sflag [#allocation6], %s1879
          %s1881 = sand.u32 %s196, 1
          %s1882 = smul.addr %s1881, 16
          %s1883 = scalar_lea.vmem [#allocation13], %s1882
          %1884 = dma.done %s1880, 256
        $region124: #{tpu_custom_call.1} parent=119 // pred_fallthru
          _
      $region120: #{tpu_custom_call.1} parent=5 // pred_fallthru
        _
    $region6: #{tpu_custom_call.1} parent=1 // loop_footer
      %s23 = sadd.s32 1, %s19
    $region7: #{tpu_custom_call.1} parent=1 // loop_footer_branch
      %18 = sbr.rel target = $region3
    $region8: #{tpu_custom_call.1} parent=1 // loop_exit
      _
    %1885 = vsyncpa [#allocation5], 1
    %s1886 = scalar_lea.sflag [#allocation5], 1
    %1887 = vsyncpa %s1886, 1
    %1888 = vsyncpa [#allocation8], 1
    %1889 = vsyncpa [#allocation6], 1
    %s1890 = scalar_lea.sflag [#allocation6], 1
    %1891 = vsyncpa %s1890, 1

</llo_original>
